<compile_context>
chip_gen: v7x
topology: tpu7x:2x2x1
jax: 0.10.0
libtpu: 0.0.40
codegen_flags: <defaults>
</compile_context>

<pallas_src>
import jax
import jax.numpy as jnp
from jax.experimental import pallas as pl
from jax.experimental.pallas import tpu as pltpu

# Scoped-VMEM budget: safe on v5e/v6e (128 MiB phys) and v7x (64 MiB phys).
_VMEM_LIMIT = 32 * 1024 * 1024


def _sigmoid(x):
    # sigmoid(x) == 0.5*(tanh(x/2)+1): tanh goes to the EUP slot, leaving only a
    # mul+add on the VPU (cheaper than the multi-op f32 divide of 1/(1+e^-x)).
    return 0.5 * (jnp.tanh(0.5 * x) + 1.0)


def _make_fused_kernel(has_mask):
    """Fused LSTM1 -> attention -> LSTM2 kernel over one batch tile."""

    def kernel(*refs):
        if has_mask:
            (sh_ref, sc_ref, xt_ref, patt_ref, feats_ref, mask_ref,
             w1x_ref, w1h_ref, b1_ref,
             w2a_ref, w2h_ref, w2s_ref, b2_ref,
             wh2a_ref, bh2a_ref, walpha_ref,
             out_ref, hstate_ref, cstate_ref) = refs
        else:
            (sh_ref, sc_ref, xt_ref, patt_ref, feats_ref,
             w1x_ref, w1h_ref, b1_ref,
             w2a_ref, w2h_ref, w2s_ref, b2_ref,
             wh2a_ref, bh2a_ref, walpha_ref,
             out_ref, hstate_ref, cstate_ref) = refs

        f32 = jnp.float32
        h0 = sh_ref[0].astype(f32)           # (bt, R)  LSTM1 hidden
        h1 = sh_ref[1].astype(f32)           # (bt, R)  LSTM2 hidden
        c0 = sc_ref[0].astype(f32)
        c1 = sc_ref[1].astype(f32)
        x = xt_ref[...].astype(f32)          # (bt, E)
        R = h0.shape[1]

        # ---- LSTM1: single fused 4-gate matmul, gate blocks [i | f | g | o] ----
        g1 = (jnp.dot(x, w1x_ref[...], preferred_element_type=f32)
              + jnp.dot(h0, w1h_ref[...], preferred_element_type=f32)
              + b1_ref[...])                 # (bt, 4R)
        i1 = _sigmoid(g1[:, 0 * R:1 * R])
        f1 = _sigmoid(g1[:, 1 * R:2 * R])
        gg1 = jnp.tanh(g1[:, 2 * R:3 * R])
        o1 = _sigmoid(g1[:, 3 * R:4 * R])
        c_att = f1 * c0 + i1 * gg1
        h_att = o1 * jnp.tanh(c_att)         # (bt, R)

        # ---- Attention (scores stay sublane-major: (bt, A, 1)) ----
        att_h = (jnp.dot(h_att, wh2a_ref[...], preferred_element_type=f32)
                 + bh2a_ref[...])                                   # (bt, H)
        patt = patt_ref[...].astype(f32)                            # (bt, A, H)
        dot = jnp.tanh(patt + att_h[:, None, :])                    # (bt, A, H)
        # alpha_net: VPU mul + lane reduce over H (b_alpha cancels under softmax)
        scores = jnp.sum(dot * walpha_ref[...], axis=-1, keepdims=True)  # (bt,A,1)
        m = jnp.max(scores, axis=1, keepdims=True)                  # (bt, 1, 1)
        e = jnp.exp(scores - m)                                     # (bt, A, 1)
        if has_mask:
            # fused masked softmax: exp*mask / sum(exp*mask) == softmax*mask/renorm
            e = e * mask_ref[...].astype(f32)[:, :, None]
        denom = jnp.sum(e, axis=1, keepdims=True)                   # (bt, 1, 1)
        inv = pl.reciprocal(denom, approx=True)
        inv = inv * (2.0 - denom * inv)      # one Newton step -> near-exact
        w = e * inv                                                 # (bt, A, 1)

        # weighted feature sum: VPU multiply + sublane reduce over A
        feats = feats_ref[...].astype(f32)                          # (bt, A, R)
        att = jnp.sum(w * feats, axis=1)                            # (bt, R)

        # ---- LSTM2 on [att, h_att] (concat removed: split input weights) ----
        g2 = (jnp.dot(att, w2a_ref[...], preferred_element_type=f32)
              + jnp.dot(h_att, w2h_ref[...], preferred_element_type=f32)
              + jnp.dot(h1, w2s_ref[...], preferred_element_type=f32)
              + b2_ref[...])                 # (bt, 4R)
        i2 = _sigmoid(g2[:, 0 * R:1 * R])
        f2 = _sigmoid(g2[:, 1 * R:2 * R])
        gg2 = jnp.tanh(g2[:, 2 * R:3 * R])
        o2 = _sigmoid(g2[:, 3 * R:4 * R])
        c_lang = f2 * c1 + i2 * gg2
        h_lang = o2 * jnp.tanh(c_lang)

        # ---- direct stores: output + both (2, bt, R) state slabs ----
        # TODO(synk): F.dropout(h_lang) is identity at inference; training-mode
        # dropout (drop_prob_lm) is not implemented here.
        out_ref[...] = h_lang.astype(out_ref.dtype)
        hstate_ref[0] = h_att.astype(hstate_ref.dtype)
        hstate_ref[1] = h_lang.astype(hstate_ref.dtype)
        cstate_ref[0] = c_att.astype(cstate_ref.dtype)
        cstate_ref[1] = c_lang.astype(cstate_ref.dtype)

    return kernel


def gtssg_core_forward(params, xt, fc_feats, att_feats, p_att_feats, state,
                       att_masks=None, *, block_batch=128):
    """Fused GTssgCore forward. Returns (output, (h_state, c_state))."""
    del fc_feats  # unused by the PyTorch forward (matches the reference)
    B, E = xt.shape
    _, A, Rf = att_feats.shape            # Rf == rnn_size (att feature dim)
    R = state[0].shape[-1]
    H = params["w_h2att"].shape[1]

    # Batch tile. block_batch must be a multiple of 8; a full-batch tile is also
    # always legal. Lower block_batch on v7x if >=2 grid steps are desired.
    bt = min(block_batch, B)
    # VMEM guard: the streamed (bt,A,H)+(bt,A,Rf) blocks are double-buffered;
    # keep them inside ~half the scoped budget (re-derived per call so realistic
    # A/H shapes stay safe on v7x's 64 MiB physical VMEM).
    row_bytes = A * (p_att_feats.dtype.itemsize * H + att_feats.dtype.itemsize * Rf)
    cap = (_VMEM_LIMIT // 4) // max(1, row_bytes)
    if cap >= 8:
        bt = min(bt, max(8, (cap // 8) * 8))
    if bt < B:
        bt = max(8, (bt // 8) * 8)        # (8,128) sublane rule for partial tiles
    grid = (pl.cdiv(B, bt),)

    has_mask = att_masks is not None
    kernel = _make_fused_kernel(has_mask)

    f32 = jnp.float32
    b1 = params["lstm1_b"].reshape(1, 4 * R).astype(f32)
    b2 = params["lstm2_b"].reshape(1, 4 * R).astype(f32)
    bh2a = params["b_h2att"].reshape(1, H).astype(f32)
    walpha = params["w_alpha"].reshape(1, H).astype(f32)
    # b_alpha shifts every score by a constant -> cancels under softmax: dropped.

    in_specs = [
        pl.BlockSpec((2, bt, R), lambda i: (0, i, 0)),     # state[0] = (h0, h1)
        pl.BlockSpec((2, bt, R), lambda i: (0, i, 0)),     # state[1] = (c0, c1)
        pl.BlockSpec((bt, E), lambda i: (i, 0)),           # xt
        pl.BlockSpec((bt, A, H), lambda i: (i, 0, 0)),     # p_att_feats (bf16 ok)
        pl.BlockSpec((bt, A, Rf), lambda i: (i, 0, 0)),    # att_feats   (bf16 ok)
    ]
    args = [state[0], state[1], xt, p_att_feats, att_feats]
    if has_mask:
        in_specs.append(pl.BlockSpec((bt, A), lambda i: (i, 0)))
        args.append(att_masks.astype(f32))
    in_specs += [
        pl.BlockSpec((E, 4 * R), lambda i: (0, 0)),        # lstm1 W_x  (fused gates)
        pl.BlockSpec((R, 4 * R), lambda i: (0, 0)),        # lstm1 W_h
        pl.BlockSpec((1, 4 * R), lambda i: (0, 0)),        # lstm1 b
        pl.BlockSpec((Rf, 4 * R), lambda i: (0, 0)),       # lstm2 W (att half)
        pl.BlockSpec((R, 4 * R), lambda i: (0, 0)),        # lstm2 W (h_att half)
        pl.BlockSpec((R, 4 * R), lambda i: (0, 0)),        # lstm2 W (hidden)
        pl.BlockSpec((1, 4 * R), lambda i: (0, 0)),        # lstm2 b
        pl.BlockSpec((R, H), lambda i: (0, 0)),            # W_h2att
        pl.BlockSpec((1, H), lambda i: (0, 0)),            # b_h2att
        pl.BlockSpec((1, H), lambda i: (0, 0)),            # w_alpha
    ]
    args += [params["lstm1_w_x"].astype(f32), params["lstm1_w_h"].astype(f32), b1,
             params["lstm2_w_att"].astype(f32), params["lstm2_w_hatt"].astype(f32),
             params["lstm2_w_h"].astype(f32), b2,
             params["w_h2att"].astype(f32), bh2a, walpha]

    out_shape = (jax.ShapeDtypeStruct((B, R), f32),        # output (= h_lang)
                 jax.ShapeDtypeStruct((2, B, R), f32),     # stacked h state
                 jax.ShapeDtypeStruct((2, B, R), f32))     # stacked c state
    out_specs = [pl.BlockSpec((bt, R), lambda i: (i, 0)),
                 pl.BlockSpec((2, bt, R), lambda i: (0, i, 0)),
                 pl.BlockSpec((2, bt, R), lambda i: (0, i, 0))]

    output, h_state, c_state = pl.pallas_call(
        kernel,
        out_shape=out_shape,
        grid_spec=pltpu.PrefetchScalarGridSpec(
            num_scalar_prefetch=0,
            grid=grid,
            in_specs=in_specs,
            out_specs=out_specs),
        compiler_params=pltpu.CompilerParams(
            dimension_semantics=("parallel",),
            vmem_limit_bytes=_VMEM_LIMIT),
    )(*args)
    return output, (h_state, c_state)


# ---------------------------------------------------------------------------
# Pure-JAX reference (mirrors the PyTorch forward exactly, incl. b_alpha)
# ---------------------------------------------------------------------------
def _lstm_from_gates(gates, c):
    R = c.shape[1]
    i = jax.nn.sigmoid(gates[:, 0 * R:1 * R])
    f = jax.nn.sigmoid(gates[:, 1 * R:2 * R])
    g = jnp.tanh(gates[:, 2 * R:3 * R])
    o = jax.nn.sigmoid(gates[:, 3 * R:4 * R])
    c_new = f * c + i * g
    return o * jnp.tanh(c_new), c_new


def gtssg_core_ref(params, xt, fc_feats, att_feats, p_att_feats, state,
                   att_masks=None):
    del fc_feats
    f32 = jnp.float32
    hp = 'highest'
    h0, h1 = state[0][0].astype(f32), state[0][1].astype(f32)
    c0, c1 = state[1][0].astype(f32), state[1][1].astype(f32)
    x = xt.astype(f32)

    g1 = (jnp.dot(x, params["lstm1_w_x"], precision=hp)
          + jnp.dot(h0, params["lstm1_w_h"], precision=hp) + params["lstm1_b"])
    h_att, c_att = _lstm_from_gates(g1, c0)

    att_h = jnp.dot(h_att, params["w_h2att"], precision=hp) + params["b_h2att"]
    dot = jnp.tanh(p_att_feats.astype(f32) + att_h[:, None, :])
    scores = jnp.einsum('bah,h->ba', dot, params["w_alpha"],
                        precision=hp) + params["b_alpha"]
    weight = jax.nn.softmax(scores, axis=1)
    if att_masks is not None:
        weight = weight * att_masks.astype(f32)
        weight = weight / weight.sum(1, keepdims=True)
    att = jnp.einsum('ba,bar->br', weight, att_feats.astype(f32), precision=hp)

    g2 = (jnp.dot(att, params["lstm2_w_att"], precision=hp)
          + jnp.dot(h_att, params["lstm2_w_hatt"], precision=hp)
          + jnp.dot(h1, params["lstm2_w_h"], precision=hp) + params["lstm2_b"])
    h_lang, c_lang = _lstm_from_gates(g2, c1)
    output = h_lang  # F.dropout is identity at inference
    return output, (jnp.stack([h_att, h_lang]), jnp.stack([c_att, c_lang]))


if __name__ == "__main__":
    # opt.input_encoding_size = 32, opt.rnn_size = 32, opt.att_hid_size = 32, 8 regions
    B, E, R, H, A = 2, 32, 32, 32, 8

    key = jax.random.PRNGKey(0)
    ks = jax.random.split(key, 16)

    xt = jax.random.normal(ks[0], (B, E), jnp.float32)
    fc_feats = jax.random.normal(ks[1], (B, R), jnp.float32)        # unused by forward
    # big attention tensors streamed in bf16 (HBM bandwidth win), upcast in-kernel
    att_feats = jax.random.normal(ks[2], (B, A, R), jnp.float32).astype(jnp.bfloat16)
    p_att_feats = jax.random.normal(ks[3], (B, A, H), jnp.float32).astype(jnp.bfloat16)

    state = (jax.random.normal(ks[4], (2, B, R), jnp.float32) * 0.1,
             jax.random.normal(ks[5], (2, B, R), jnp.float32) * 0.1)

    params = {
        # fused-gate layout: columns are [i | f | g | o] blocks of width R
        "lstm1_w_x":    jax.random.normal(ks[6], (E, 4 * R), jnp.float32) * 0.1,
        "lstm1_w_h":    jax.random.normal(ks[7], (R, 4 * R), jnp.float32) * 0.1,
        "lstm1_b":      jax.random.normal(ks[8], (4 * R,), jnp.float32) * 0.1,
        "lstm2_w_att":  jax.random.normal(ks[9], (R, 4 * R), jnp.float32) * 0.1,
        "lstm2_w_hatt": jax.random.normal(ks[10], (R, 4 * R), jnp.float32) * 0.1,
        "lstm2_w_h":    jax.random.normal(ks[11], (R, 4 * R), jnp.float32) * 0.1,
        "lstm2_b":      jax.random.normal(ks[12], (4 * R,), jnp.float32) * 0.1,
        "w_h2att":      jax.random.normal(ks[13], (R, H), jnp.float32) * 0.1,
        "b_h2att":      jax.random.normal(ks[14], (H,), jnp.float32) * 0.1,
        "w_alpha":      jax.random.normal(ks[15], (H,), jnp.float32) * 0.1,
        "b_alpha":      jnp.float32(0.05),
    }

    att_masks = (jax.random.uniform(jax.random.PRNGKey(1), (B, A)) > 0.2
                 ).astype(jnp.float32)
    att_masks = att_masks.at[:, 0].set(1.0)   # guarantee a valid position per row

    out, new_state = gtssg_core_forward(params, xt, fc_feats, att_feats,
                                        p_att_feats, state, att_masks)
    jax.block_until_ready(out)

    ref_out, ref_state = gtssg_core_ref(params, xt, fc_feats, att_feats,
                                        p_att_feats, state, att_masks)

    def _maxdiff(a, b):
        return float(jnp.max(jnp.abs(a - b)))

    assert out.shape == (B, R)
    assert new_state[0].shape == (2, B, R) and new_state[1].shape == (2, B, R)
    tol = 2e-2   # MXU f32 vs 'highest' precision reference
    assert _maxdiff(out, ref_out) < tol, "output mismatch vs reference"
    assert _maxdiff(new_state[0], ref_state[0]) < tol, "h-state mismatch"
    assert _maxdiff(new_state[1], ref_state[1]) < tol, "c-state mismatch"

    # no-mask fast path (mask DMA + mask math skipped at trace time)
    out_nm, state_nm = gtssg_core_forward(params, xt, fc_feats, att_feats,
                                          p_att_feats, state, None)
    jax.block_until_ready(out_nm)
    ref_nm, ref_state_nm = gtssg_core_ref(params, xt, fc_feats, att_feats,
                                          p_att_feats, state, None)
    assert _maxdiff(out_nm, ref_nm) < tol, "output mismatch (no mask)"
    assert _maxdiff(state_nm[0], ref_state_nm[0]) < tol, "h-state mismatch (no mask)"
    assert _maxdiff(state_nm[1], ref_state_nm[1]) < tol, "c-state mismatch (no mask)"

    print("KERNEL_OK")
</pallas_src>

<mosaic_0001>
module attributes {stable_mosaic.version = 11 : i64} {
  func.func @kernel(%arg0: i32, %arg1: memref<2x2x32xf32, #tpu.memory_space<vmem>>, %arg2: memref<2x2x32xf32, #tpu.memory_space<vmem>>, %arg3: memref<2x32xf32, #tpu.memory_space<vmem>>, %arg4: memref<2x8x32xbf16, #tpu.memory_space<vmem>>, %arg5: memref<2x8x32xbf16, #tpu.memory_space<vmem>>, %arg6: memref<2x8xf32, #tpu.memory_space<vmem>>, %arg7: memref<32x128xf32, #tpu.memory_space<vmem>>, %arg8: memref<32x128xf32, #tpu.memory_space<vmem>>, %arg9: memref<1x128xf32, #tpu.memory_space<vmem>>, %arg10: memref<32x128xf32, #tpu.memory_space<vmem>>, %arg11: memref<32x128xf32, #tpu.memory_space<vmem>>, %arg12: memref<32x128xf32, #tpu.memory_space<vmem>>, %arg13: memref<1x128xf32, #tpu.memory_space<vmem>>, %arg14: memref<32x32xf32, #tpu.memory_space<vmem>>, %arg15: memref<1x32xf32, #tpu.memory_space<vmem>>, %arg16: memref<1x32xf32, #tpu.memory_space<vmem>>, %arg17: memref<2x32xf32, #tpu.memory_space<vmem>>, %arg18: memref<2x2x32xf32, #tpu.memory_space<vmem>>, %arg19: memref<2x2x32xf32, #tpu.memory_space<vmem>>) attributes {dimension_semantics = [#tpu.dimension_semantics<parallel>], iteration_bounds = array<i64: 1>, scalar_prefetch = 0 : i64, scratch_operands = 0 : i64, tpu.core_type = #tpu.core_type<tc>, window_params = [{transform_indices = @transform_0, window_bounds = array<i64: 2, 2, 32>}, {transform_indices = @transform_1, window_bounds = array<i64: 2, 2, 32>}, {transform_indices = @transform_2, window_bounds = array<i64: 2, 32>}, {transform_indices = @transform_3, window_bounds = array<i64: 2, 8, 32>}, {transform_indices = @transform_4, window_bounds = array<i64: 2, 8, 32>}, {transform_indices = @transform_5, window_bounds = array<i64: 2, 8>}, {pipeline_mode = #tpu.pipeline_mode<synchronous>, transform_indices = @transform_6, window_bounds = array<i64: 32, 128>}, {pipeline_mode = #tpu.pipeline_mode<synchronous>, transform_indices = @transform_7, window_bounds = array<i64: 32, 128>}, {pipeline_mode = #tpu.pipeline_mode<synchronous>, transform_indices = @transform_8, window_bounds = array<i64: 1, 128>}, {pipeline_mode = #tpu.pipeline_mode<synchronous>, transform_indices = @transform_9, window_bounds = array<i64: 32, 128>}, {pipeline_mode = #tpu.pipeline_mode<synchronous>, transform_indices = @transform_10, window_bounds = array<i64: 32, 128>}, {pipeline_mode = #tpu.pipeline_mode<synchronous>, transform_indices = @transform_11, window_bounds = array<i64: 32, 128>}, {pipeline_mode = #tpu.pipeline_mode<synchronous>, transform_indices = @transform_12, window_bounds = array<i64: 1, 128>}, {pipeline_mode = #tpu.pipeline_mode<synchronous>, transform_indices = @transform_13, window_bounds = array<i64: 32, 32>}, {pipeline_mode = #tpu.pipeline_mode<synchronous>, transform_indices = @transform_14, window_bounds = array<i64: 1, 32>}, {pipeline_mode = #tpu.pipeline_mode<synchronous>, transform_indices = @transform_15, window_bounds = array<i64: 1, 32>}, {transform_indices = @transform_16, window_bounds = array<i64: 2, 32>}, {transform_indices = @transform_17, window_bounds = array<i64: 2, 2, 32>}, {transform_indices = @transform_18, window_bounds = array<i64: 2, 2, 32>}]} {
    %c0 = arith.constant 0 : index
    %c0_0 = arith.constant 0 : index
    %c0_1 = arith.constant 0 : index
    %0 = vector.load %arg1[%c0, %c0_0, %c0_1] : memref<2x2x32xf32, #tpu.memory_space<vmem>>, vector<1x2x32xf32>
    %1 = vector.shape_cast %0 : vector<1x2x32xf32> to vector<2x32xf32>
    %c1 = arith.constant 1 : index
    %c0_2 = arith.constant 0 : index
    %c0_3 = arith.constant 0 : index
    %2 = vector.load %arg1[%c1, %c0_2, %c0_3] : memref<2x2x32xf32, #tpu.memory_space<vmem>>, vector<1x2x32xf32>
    %3 = vector.shape_cast %2 : vector<1x2x32xf32> to vector<2x32xf32>
    %c0_4 = arith.constant 0 : index
    %c0_5 = arith.constant 0 : index
    %c0_6 = arith.constant 0 : index
    %4 = vector.load %arg2[%c0_4, %c0_5, %c0_6] : memref<2x2x32xf32, #tpu.memory_space<vmem>>, vector<1x2x32xf32>
    %5 = vector.shape_cast %4 : vector<1x2x32xf32> to vector<2x32xf32>
    %c1_7 = arith.constant 1 : index
    %c0_8 = arith.constant 0 : index
    %c0_9 = arith.constant 0 : index
    %6 = vector.load %arg2[%c1_7, %c0_8, %c0_9] : memref<2x2x32xf32, #tpu.memory_space<vmem>>, vector<1x2x32xf32>
    %7 = vector.shape_cast %6 : vector<1x2x32xf32> to vector<2x32xf32>
    %c0_10 = arith.constant 0 : index
    %c0_11 = arith.constant 0 : index
    %8 = vector.load %arg3[%c0_10, %c0_11] : memref<2x32xf32, #tpu.memory_space<vmem>>, vector<2x32xf32>
    %c0_12 = arith.constant 0 : index
    %c0_13 = arith.constant 0 : index
    %9 = vector.load %arg7[%c0_12, %c0_13] : memref<32x128xf32, #tpu.memory_space<vmem>>, vector<32x128xf32>
    %cst = arith.constant dense<0.000000e+00> : vector<2x128xf32>
    %10 = tpu.matmul %8, %9, %cst {dimension_numbers = #tpu.dot_dimension_numbers<[1], [0], [0], [1], [0, 0, 1, 1], [], []>} : vector<2x32xf32>, vector<32x128xf32>, vector<2x128xf32> -> vector<2x128xf32>
    %c0_14 = arith.constant 0 : index
    %c0_15 = arith.constant 0 : index
    %11 = vector.load %arg8[%c0_14, %c0_15] : memref<32x128xf32, #tpu.memory_space<vmem>>, vector<32x128xf32>
    %cst_16 = arith.constant dense<0.000000e+00> : vector<2x128xf32>
    %12 = tpu.matmul %1, %11, %cst_16 {dimension_numbers = #tpu.dot_dimension_numbers<[1], [0], [0], [1], [0, 0, 1, 1], [], []>} : vector<2x32xf32>, vector<32x128xf32>, vector<2x128xf32> -> vector<2x128xf32>
    %13 = arith.addf %10, %12 : vector<2x128xf32>
    %c0_17 = arith.constant 0 : index
    %c0_18 = arith.constant 0 : index
    %14 = vector.load %arg9[%c0_17, %c0_18] : memref<1x128xf32, #tpu.memory_space<vmem>>, vector<1x128xf32>
    %15 = vector.broadcast %14 : vector<1x128xf32> to vector<2x128xf32>
    %16 = arith.addf %13, %15 : vector<2x128xf32>
    %17 = vector.extract_strided_slice %16 {offsets = [0, 0], sizes = [2, 32], strides = [1, 1]} : vector<2x128xf32> to vector<2x32xf32>
    %cst_19 = arith.constant 5.000000e-01 : f32
    %18 = vector.broadcast %cst_19 : f32 to vector<2x32xf32>
    %19 = arith.mulf %18, %17 : vector<2x32xf32>
    %20 = math.tanh %19 : vector<2x32xf32>
    %cst_20 = arith.constant 1.000000e+00 : f32
    %21 = vector.broadcast %cst_20 : f32 to vector<2x32xf32>
    %22 = arith.addf %20, %21 : vector<2x32xf32>
    %cst_21 = arith.constant 5.000000e-01 : f32
    %23 = vector.broadcast %cst_21 : f32 to vector<2x32xf32>
    %24 = arith.mulf %23, %22 : vector<2x32xf32>
    %25 = vector.extract_strided_slice %16 {offsets = [0, 32], sizes = [2, 32], strides = [1, 1]} : vector<2x128xf32> to vector<2x32xf32>
    %cst_22 = arith.constant 5.000000e-01 : f32
    %26 = vector.broadcast %cst_22 : f32 to vector<2x32xf32>
    %27 = arith.mulf %26, %25 : vector<2x32xf32>
    %28 = math.tanh %27 : vector<2x32xf32>
    %cst_23 = arith.constant 1.000000e+00 : f32
    %29 = vector.broadcast %cst_23 : f32 to vector<2x32xf32>
    %30 = arith.addf %28, %29 : vector<2x32xf32>
    %cst_24 = arith.constant 5.000000e-01 : f32
    %31 = vector.broadcast %cst_24 : f32 to vector<2x32xf32>
    %32 = arith.mulf %31, %30 : vector<2x32xf32>
    %33 = vector.extract_strided_slice %16 {offsets = [0, 64], sizes = [2, 32], strides = [1, 1]} : vector<2x128xf32> to vector<2x32xf32>
    %34 = math.tanh %33 : vector<2x32xf32>
    %35 = vector.extract_strided_slice %16 {offsets = [0, 96], sizes = [2, 32], strides = [1, 1]} : vector<2x128xf32> to vector<2x32xf32>
    %cst_25 = arith.constant 5.000000e-01 : f32
    %36 = vector.broadcast %cst_25 : f32 to vector<2x32xf32>
    %37 = arith.mulf %36, %35 : vector<2x32xf32>
    %38 = math.tanh %37 : vector<2x32xf32>
    %cst_26 = arith.constant 1.000000e+00 : f32
    %39 = vector.broadcast %cst_26 : f32 to vector<2x32xf32>
    %40 = arith.addf %38, %39 : vector<2x32xf32>
    %cst_27 = arith.constant 5.000000e-01 : f32
    %41 = vector.broadcast %cst_27 : f32 to vector<2x32xf32>
    %42 = arith.mulf %41, %40 : vector<2x32xf32>
    %43 = arith.mulf %32, %5 : vector<2x32xf32>
    %44 = arith.mulf %24, %34 : vector<2x32xf32>
    %45 = arith.addf %43, %44 : vector<2x32xf32>
    %46 = math.tanh %45 : vector<2x32xf32>
    %47 = arith.mulf %42, %46 : vector<2x32xf32>
    %c0_28 = arith.constant 0 : index
    %c0_29 = arith.constant 0 : index
    %48 = vector.load %arg14[%c0_28, %c0_29] : memref<32x32xf32, #tpu.memory_space<vmem>>, vector<32x32xf32>
    %cst_30 = arith.constant dense<0.000000e+00> : vector<2x32xf32>
    %49 = tpu.matmul %47, %48, %cst_30 {dimension_numbers = #tpu.dot_dimension_numbers<[1], [0], [0], [1], [0, 0, 1, 1], [], []>} : vector<2x32xf32>, vector<32x32xf32>, vector<2x32xf32> -> vector<2x32xf32>
    %c0_31 = arith.constant 0 : index
    %c0_32 = arith.constant 0 : index
    %50 = vector.load %arg15[%c0_31, %c0_32] : memref<1x32xf32, #tpu.memory_space<vmem>>, vector<1x32xf32>
    %51 = vector.broadcast %50 : vector<1x32xf32> to vector<2x32xf32>
    %52 = arith.addf %49, %51 : vector<2x32xf32>
    %c0_33 = arith.constant 0 : index
    %c0_34 = arith.constant 0 : index
    %c0_35 = arith.constant 0 : index
    %53 = vector.load %arg4[%c0_33, %c0_34, %c0_35] : memref<2x8x32xbf16, #tpu.memory_space<vmem>>, vector<2x8x32xbf16>
    %54 = arith.extf %53 : vector<2x8x32xbf16> to vector<2x8x32xf32>
    %55 = vector.shape_cast %52 : vector<2x32xf32> to vector<2x1x32xf32>
    %56 = vector.broadcast %55 : vector<2x1x32xf32> to vector<2x8x32xf32>
    %57 = arith.addf %54, %56 : vector<2x8x32xf32>
    %58 = math.tanh %57 : vector<2x8x32xf32>
    %c0_36 = arith.constant 0 : index
    %c0_37 = arith.constant 0 : index
    %59 = vector.load %arg16[%c0_36, %c0_37] : memref<1x32xf32, #tpu.memory_space<vmem>>, vector<1x32xf32>
    %60 = vector.shape_cast %59 : vector<1x32xf32> to vector<1x1x32xf32>
    %61 = vector.broadcast %60 : vector<1x1x32xf32> to vector<2x8x32xf32>
    %62 = arith.mulf %58, %61 : vector<2x8x32xf32>
    %cst_38 = arith.constant dense<0.000000e+00> : vector<2x8xf32>
    %63 = vector.multi_reduction <add>, %62, %cst_38 [2] : vector<2x8x32xf32> to vector<2x8xf32>
    %64 = vector.shape_cast %63 : vector<2x8xf32> to vector<2x8x1xf32>
    %cst_39 = arith.constant dense<0xFF800000> : vector<2x1xf32>
    %65 = vector.multi_reduction <maximumf>, %64, %cst_39 [1] : vector<2x8x1xf32> to vector<2x1xf32>
    %66 = vector.shape_cast %65 : vector<2x1xf32> to vector<2x1x1xf32>
    %67 = vector.broadcast %66 : vector<2x1x1xf32> to vector<2x8x1xf32>
    %68 = arith.subf %64, %67 : vector<2x8x1xf32>
    %69 = math.exp %68 : vector<2x8x1xf32>
    %c0_40 = arith.constant 0 : index
    %c0_41 = arith.constant 0 : index
    %70 = vector.load %arg6[%c0_40, %c0_41] : memref<2x8xf32, #tpu.memory_space<vmem>>, vector<2x8xf32>
    %71 = vector.shape_cast %70 : vector<2x8xf32> to vector<2x8x1xf32>
    %72 = arith.mulf %69, %71 : vector<2x8x1xf32>
    %cst_42 = arith.constant dense<0.000000e+00> : vector<2x1xf32>
    %73 = vector.multi_reduction <add>, %72, %cst_42 [1] : vector<2x8x1xf32> to vector<2x1xf32>
    %74 = vector.shape_cast %73 : vector<2x1xf32> to vector<2x1x1xf32>
    %75 = tpu.reciprocal %74 {approx = true} : vector<2x1x1xf32> -> vector<2x1x1xf32>
    %76 = arith.mulf %74, %75 : vector<2x1x1xf32>
    %cst_43 = arith.constant 2.000000e+00 : f32
    %77 = vector.broadcast %cst_43 : f32 to vector<2x1x1xf32>
    %78 = arith.subf %77, %76 : vector<2x1x1xf32>
    %79 = arith.mulf %75, %78 : vector<2x1x1xf32>
    %80 = vector.broadcast %79 : vector<2x1x1xf32> to vector<2x8x1xf32>
    %81 = arith.mulf %72, %80 : vector<2x8x1xf32>
    %c0_44 = arith.constant 0 : index
    %c0_45 = arith.constant 0 : index
    %c0_46 = arith.constant 0 : index
    %82 = vector.load %arg5[%c0_44, %c0_45, %c0_46] : memref<2x8x32xbf16, #tpu.memory_space<vmem>>, vector<2x8x32xbf16>
    %83 = arith.extf %82 : vector<2x8x32xbf16> to vector<2x8x32xf32>
    %84 = vector.broadcast %81 : vector<2x8x1xf32> to vector<2x8x32xf32>
    %85 = arith.mulf %84, %83 : vector<2x8x32xf32>
    %cst_47 = arith.constant dense<0.000000e+00> : vector<2x32xf32>
    %86 = vector.multi_reduction <add>, %85, %cst_47 [1] : vector<2x8x32xf32> to vector<2x32xf32>
    %c0_48 = arith.constant 0 : index
    %c0_49 = arith.constant 0 : index
    %87 = vector.load %arg10[%c0_48, %c0_49] : memref<32x128xf32, #tpu.memory_space<vmem>>, vector<32x128xf32>
    %cst_50 = arith.constant dense<0.000000e+00> : vector<2x128xf32>
    %88 = tpu.matmul %86, %87, %cst_50 {dimension_numbers = #tpu.dot_dimension_numbers<[1], [0], [0], [1], [0, 0, 1, 1], [], []>} : vector<2x32xf32>, vector<32x128xf32>, vector<2x128xf32> -> vector<2x128xf32>
    %c0_51 = arith.constant 0 : index
    %c0_52 = arith.constant 0 : index
    %89 = vector.load %arg11[%c0_51, %c0_52] : memref<32x128xf32, #tpu.memory_space<vmem>>, vector<32x128xf32>
    %cst_53 = arith.constant dense<0.000000e+00> : vector<2x128xf32>
    %90 = tpu.matmul %47, %89, %cst_53 {dimension_numbers = #tpu.dot_dimension_numbers<[1], [0], [0], [1], [0, 0, 1, 1], [], []>} : vector<2x32xf32>, vector<32x128xf32>, vector<2x128xf32> -> vector<2x128xf32>
    %91 = arith.addf %88, %90 : vector<2x128xf32>
    %c0_54 = arith.constant 0 : index
    %c0_55 = arith.constant 0 : index
    %92 = vector.load %arg12[%c0_54, %c0_55] : memref<32x128xf32, #tpu.memory_space<vmem>>, vector<32x128xf32>
    %cst_56 = arith.constant dense<0.000000e+00> : vector<2x128xf32>
    %93 = tpu.matmul %3, %92, %cst_56 {dimension_numbers = #tpu.dot_dimension_numbers<[1], [0], [0], [1], [0, 0, 1, 1], [], []>} : vector<2x32xf32>, vector<32x128xf32>, vector<2x128xf32> -> vector<2x128xf32>
    %94 = arith.addf %91, %93 : vector<2x128xf32>
    %c0_57 = arith.constant 0 : index
    %c0_58 = arith.constant 0 : index
    %95 = vector.load %arg13[%c0_57, %c0_58] : memref<1x128xf32, #tpu.memory_space<vmem>>, vector<1x128xf32>
    %96 = vector.broadcast %95 : vector<1x128xf32> to vector<2x128xf32>
    %97 = arith.addf %94, %96 : vector<2x128xf32>
    %98 = vector.extract_strided_slice %97 {offsets = [0, 0], sizes = [2, 32], strides = [1, 1]} : vector<2x128xf32> to vector<2x32xf32>
    %cst_59 = arith.constant 5.000000e-01 : f32
    %99 = vector.broadcast %cst_59 : f32 to vector<2x32xf32>
    %100 = arith.mulf %99, %98 : vector<2x32xf32>
    %101 = math.tanh %100 : vector<2x32xf32>
    %cst_60 = arith.constant 1.000000e+00 : f32
    %102 = vector.broadcast %cst_60 : f32 to vector<2x32xf32>
    %103 = arith.addf %101, %102 : vector<2x32xf32>
    %cst_61 = arith.constant 5.000000e-01 : f32
    %104 = vector.broadcast %cst_61 : f32 to vector<2x32xf32>
    %105 = arith.mulf %104, %103 : vector<2x32xf32>
    %106 = vector.extract_strided_slice %97 {offsets = [0, 32], sizes = [2, 32], strides = [1, 1]} : vector<2x128xf32> to vector<2x32xf32>
    %cst_62 = arith.constant 5.000000e-01 : f32
    %107 = vector.broadcast %cst_62 : f32 to vector<2x32xf32>
    %108 = arith.mulf %107, %106 : vector<2x32xf32>
    %109 = math.tanh %108 : vector<2x32xf32>
    %cst_63 = arith.constant 1.000000e+00 : f32
    %110 = vector.broadcast %cst_63 : f32 to vector<2x32xf32>
    %111 = arith.addf %109, %110 : vector<2x32xf32>
    %cst_64 = arith.constant 5.000000e-01 : f32
    %112 = vector.broadcast %cst_64 : f32 to vector<2x32xf32>
    %113 = arith.mulf %112, %111 : vector<2x32xf32>
    %114 = vector.extract_strided_slice %97 {offsets = [0, 64], sizes = [2, 32], strides = [1, 1]} : vector<2x128xf32> to vector<2x32xf32>
    %115 = math.tanh %114 : vector<2x32xf32>
    %116 = vector.extract_strided_slice %97 {offsets = [0, 96], sizes = [2, 32], strides = [1, 1]} : vector<2x128xf32> to vector<2x32xf32>
    %cst_65 = arith.constant 5.000000e-01 : f32
    %117 = vector.broadcast %cst_65 : f32 to vector<2x32xf32>
    %118 = arith.mulf %117, %116 : vector<2x32xf32>
    %119 = math.tanh %118 : vector<2x32xf32>
    %cst_66 = arith.constant 1.000000e+00 : f32
    %120 = vector.broadcast %cst_66 : f32 to vector<2x32xf32>
    %121 = arith.addf %119, %120 : vector<2x32xf32>
    %cst_67 = arith.constant 5.000000e-01 : f32
    %122 = vector.broadcast %cst_67 : f32 to vector<2x32xf32>
    %123 = arith.mulf %122, %121 : vector<2x32xf32>
    %124 = arith.mulf %113, %7 : vector<2x32xf32>
    %125 = arith.mulf %105, %115 : vector<2x32xf32>
    %126 = arith.addf %124, %125 : vector<2x32xf32>
    %127 = math.tanh %126 : vector<2x32xf32>
    %128 = arith.mulf %123, %127 : vector<2x32xf32>
    %c0_68 = arith.constant 0 : index
    %c0_69 = arith.constant 0 : index
    %129 = vector.load %arg17[%c0_68, %c0_69] : memref<2x32xf32, #tpu.memory_space<vmem>>, vector<2x32xf32>
    tpu.vector_store %arg17[%c0_68, %c0_69], %128 {strides = array<i32>} : memref<2x32xf32, #tpu.memory_space<vmem>>, vector<2x32xf32>,
    %c0_70 = arith.constant 0 : index
    %c0_71 = arith.constant 0 : index
    %c0_72 = arith.constant 0 : index
    %130 = vector.load %arg18[%c0_70, %c0_71, %c0_72] : memref<2x2x32xf32, #tpu.memory_space<vmem>>, vector<1x2x32xf32>
    %131 = vector.shape_cast %130 : vector<1x2x32xf32> to vector<2x32xf32>
    %132 = vector.shape_cast %47 : vector<2x32xf32> to vector<1x2x32xf32>
    tpu.vector_store %arg18[%c0_70, %c0_71, %c0_72], %132 {strides = array<i32>} : memref<2x2x32xf32, #tpu.memory_space<vmem>>, vector<1x2x32xf32>,
    %c1_73 = arith.constant 1 : index
    %c0_74 = arith.constant 0 : index
    %c0_75 = arith.constant 0 : index
    %133 = vector.load %arg18[%c1_73, %c0_74, %c0_75] : memref<2x2x32xf32, #tpu.memory_space<vmem>>, vector<1x2x32xf32>
    %134 = vector.shape_cast %133 : vector<1x2x32xf32> to vector<2x32xf32>
    %135 = vector.shape_cast %128 : vector<2x32xf32> to vector<1x2x32xf32>
    tpu.vector_store %arg18[%c1_73, %c0_74, %c0_75], %135 {strides = array<i32>} : memref<2x2x32xf32, #tpu.memory_space<vmem>>, vector<1x2x32xf32>,
    %c0_76 = arith.constant 0 : index
    %c0_77 = arith.constant 0 : index
    %c0_78 = arith.constant 0 : index
    %136 = vector.load %arg19[%c0_76, %c0_77, %c0_78] : memref<2x2x32xf32, #tpu.memory_space<vmem>>, vector<1x2x32xf32>
    %137 = vector.shape_cast %136 : vector<1x2x32xf32> to vector<2x32xf32>
    %138 = vector.shape_cast %45 : vector<2x32xf32> to vector<1x2x32xf32>
    tpu.vector_store %arg19[%c0_76, %c0_77, %c0_78], %138 {strides = array<i32>} : memref<2x2x32xf32, #tpu.memory_space<vmem>>, vector<1x2x32xf32>,
    %c1_79 = arith.constant 1 : index
    %c0_80 = arith.constant 0 : index
    %c0_81 = arith.constant 0 : index
    %139 = vector.load %arg19[%c1_79, %c0_80, %c0_81] : memref<2x2x32xf32, #tpu.memory_space<vmem>>, vector<1x2x32xf32>
    %140 = vector.shape_cast %139 : vector<1x2x32xf32> to vector<2x32xf32>
    %141 = vector.shape_cast %126 : vector<2x32xf32> to vector<1x2x32xf32>
    tpu.vector_store %arg19[%c1_79, %c0_80, %c0_81], %141 {strides = array<i32>} : memref<2x2x32xf32, #tpu.memory_space<vmem>>, vector<1x2x32xf32>,
    return
  }
  func.func @transform_0(%arg0: i32) -> (i32, i32, i32) {
    %c0_i32 = arith.constant 0 : i32
    %c0_i32_0 = arith.constant 0 : i32
    %c0_i32_1 = arith.constant 0 : i32
    return %c0_i32, %arg0, %c0_i32_0 : i32, i32, i32
  }
  func.func @transform_1(%arg0: i32) -> (i32, i32, i32) {
    %c0_i32 = arith.constant 0 : i32
    %c0_i32_0 = arith.constant 0 : i32
    %c0_i32_1 = arith.constant 0 : i32
    return %c0_i32, %arg0, %c0_i32_0 : i32, i32, i32
  }
  func.func @transform_2(%arg0: i32) -> (i32, i32) {
    %c0_i32 = arith.constant 0 : i32
    %c0_i32_0 = arith.constant 0 : i32
    return %arg0, %c0_i32 : i32, i32
  }
  func.func @transform_3(%arg0: i32) -> (i32, i32, i32) {
    %c0_i32 = arith.constant 0 : i32
    %c0_i32_0 = arith.constant 0 : i32
    %c0_i32_1 = arith.constant 0 : i32
    return %arg0, %c0_i32, %c0_i32_0 : i32, i32, i32
  }
  func.func @transform_4(%arg0: i32) -> (i32, i32, i32) {
    %c0_i32 = arith.constant 0 : i32
    %c0_i32_0 = arith.constant 0 : i32
    %c0_i32_1 = arith.constant 0 : i32
    return %arg0, %c0_i32, %c0_i32_0 : i32, i32, i32
  }
  func.func @transform_5(%arg0: i32) -> (i32, i32) {
    %c0_i32 = arith.constant 0 : i32
    %c0_i32_0 = arith.constant 0 : i32
    return %arg0, %c0_i32 : i32, i32
  }
  func.func @transform_6(%arg0: i32) -> (i32, i32) {
    %c0_i32 = arith.constant 0 : i32
    %c0_i32_0 = arith.constant 0 : i32
    %c0_i32_1 = arith.constant 0 : i32
    return %c0_i32, %c0_i32_0 : i32, i32
  }
  func.func @transform_7(%arg0: i32) -> (i32, i32) {
    %c0_i32 = arith.constant 0 : i32
    %c0_i32_0 = arith.constant 0 : i32
    %c0_i32_1 = arith.constant 0 : i32
    return %c0_i32, %c0_i32_0 : i32, i32
  }
  func.func @transform_8(%arg0: i32) -> (i32, i32) {
    %c0_i32 = arith.constant 0 : i32
    %c0_i32_0 = arith.constant 0 : i32
    %c0_i32_1 = arith.constant 0 : i32
    return %c0_i32, %c0_i32_0 : i32, i32
  }
  func.func @transform_9(%arg0: i32) -> (i32, i32) {
    %c0_i32 = arith.constant 0 : i32
    %c0_i32_0 = arith.constant 0 : i32
    %c0_i32_1 = arith.constant 0 : i32
    return %c0_i32, %c0_i32_0 : i32, i32
  }
  func.func @transform_10(%arg0: i32) -> (i32, i32) {
    %c0_i32 = arith.constant 0 : i32
    %c0_i32_0 = arith.constant 0 : i32
    %c0_i32_1 = arith.constant 0 : i32
    return %c0_i32, %c0_i32_0 : i32, i32
  }
  func.func @transform_11(%arg0: i32) -> (i32, i32) {
    %c0_i32 = arith.constant 0 : i32
    %c0_i32_0 = arith.constant 0 : i32
    %c0_i32_1 = arith.constant 0 : i32
    return %c0_i32, %c0_i32_0 : i32, i32
  }
  func.func @transform_12(%arg0: i32) -> (i32, i32) {
    %c0_i32 = arith.constant 0 : i32
    %c0_i32_0 = arith.constant 0 : i32
    %c0_i32_1 = arith.constant 0 : i32
    return %c0_i32, %c0_i32_0 : i32, i32
  }
  func.func @transform_13(%arg0: i32) -> (i32, i32) {
    %c0_i32 = arith.constant 0 : i32
    %c0_i32_0 = arith.constant 0 : i32
    %c0_i32_1 = arith.constant 0 : i32
    return %c0_i32, %c0_i32_0 : i32, i32
  }
  func.func @transform_14(%arg0: i32) -> (i32, i32) {
    %c0_i32 = arith.constant 0 : i32
    %c0_i32_0 = arith.constant 0 : i32
    %c0_i32_1 = arith.constant 0 : i32
    return %c0_i32, %c0_i32_0 : i32, i32
  }
  func.func @transform_15(%arg0: i32) -> (i32, i32) {
    %c0_i32 = arith.constant 0 : i32
    %c0_i32_0 = arith.constant 0 : i32
    %c0_i32_1 = arith.constant 0 : i32
    return %c0_i32, %c0_i32_0 : i32, i32
  }
  func.func @transform_16(%arg0: i32) -> (i32, i32) {
    %c0_i32 = arith.constant 0 : i32
    %c0_i32_0 = arith.constant 0 : i32
    return %arg0, %c0_i32 : i32, i32
  }
  func.func @transform_17(%arg0: i32) -> (i32, i32, i32) {
    %c0_i32 = arith.constant 0 : i32
    %c0_i32_0 = arith.constant 0 : i32
    %c0_i32_1 = arith.constant 0 : i32
    return %c0_i32, %arg0, %c0_i32_0 : i32, i32, i32
  }
  func.func @transform_18(%arg0: i32) -> (i32, i32, i32) {
    %c0_i32 = arith.constant 0 : i32
    %c0_i32_0 = arith.constant 0 : i32
    %c0_i32_1 = arith.constant 0 : i32
    return %c0_i32, %arg0, %c0_i32_0 : i32, i32, i32
  }
}

</mosaic_0001>

<llo_original>
// kernel: tpu_custom_call.1
$region0: #{tpu_custom_call.1}
  #allocation0 [shape = 'u32[]', space=smem, size = 0x4, offset = 0x4, fixed_abs, tag = 'smem constant byte address 0x4 - core index']
  #allocation1 [shape = 'u32[144,128]{1,0:T(1,128)}', space=vmem, size = 0x12000, scoped, tag = 'internal scratch']
  %s0 = inlined_call_operand.hbm [shape: f32[2,2,32], index: 0, kind: input, shape index: {}]
  %s1 = inlined_call_operand.hbm [shape: f32[2,2,32], index: 1, kind: input, shape index: {}]
  %s2 = inlined_call_operand.vmem [shape: f32[2,32], index: 2, kind: input, shape index: {}]
  %s3 = inlined_call_operand.hbm [shape: bf16[2,8,32], index: 3, kind: input, shape index: {}]
  %s4 = inlined_call_operand.hbm [shape: bf16[2,8,32], index: 4, kind: input, shape index: {}]
  %s5 = inlined_call_operand.hbm [shape: f32[2,8], index: 5, kind: input, shape index: {}]
  %s6 = inlined_call_operand.hbm [shape: f32[32,128], index: 6, kind: input, shape index: {}]
  %s7 = inlined_call_operand.hbm [shape: f32[32,128], index: 7, kind: input, shape index: {}]
  %s8 = inlined_call_operand.hbm [shape: f32[1,128], index: 8, kind: input, shape index: {}]
  %s9 = inlined_call_operand.vmem [shape: f32[32,128], index: 9, kind: input, shape index: {}]
  %s10 = inlined_call_operand.hbm [shape: f32[32,128], index: 10, kind: input, shape index: {}]
  %s11 = inlined_call_operand.hbm [shape: f32[32,128], index: 11, kind: input, shape index: {}]
  %s12 = inlined_call_operand.vmem [shape: f32[1,128], index: 12, kind: input, shape index: {}]
  %s13 = inlined_call_operand.hbm [shape: f32[32,32], index: 13, kind: input, shape index: {}]
  %s14 = inlined_call_operand.vmem [shape: f32[1,32], index: 14, kind: input, shape index: {}]
  %s15 = inlined_call_operand.vmem [shape: f32[1,32], index: 15, kind: input, shape index: {}]
  %s16 = inlined_call_operand.hbm [shape: f32[2,32], index: 16, kind: output, shape index: {0}]
  %s17 = inlined_call_operand.hbm [shape: f32[2,2,32], index: 17, kind: output, shape index: {1}]
  %s18 = inlined_call_operand.hbm [shape: f32[2,2,32], index: 18, kind: output, shape index: {2}]
  %19 = xla_tuple %s16, %s17, %s18
  %s20 = sld [smem:[#allocation0]]
  $region134: #{tpu_custom_call.1} parent=0
    _
  %s22 = ssub.s32 1, %s20
  %s23 = scalar_select 0, %s22, %s20
  $region1: #{tpu_custom_call.1} parent=0
    #allocation2 [shape = 'u8[2048]{0}', space=vmem, size = 0x800, scoped, tag = 'input window, operand 0, single buffered']
    #allocation3 [shape = 's32[1]{0}', space=sflag, size = 0x4, scoped, tag = 'scoped memory for tpu_custom_call.1']
    #allocation4 [shape = 's32[1]{0}', space=sflag, size = 0x4, scoped, tag = 'scoped memory for tpu_custom_call.1']
    #allocation5 [shape = 'u8[2048]{0}', space=vmem, size = 0x800, scoped, tag = 'input window, operand 1, single buffered']
    #allocation6 [shape = 's32[1]{0}', space=sflag, size = 0x4, scoped, tag = 'scoped memory for tpu_custom_call.1']
    #allocation7 [shape = 'u8[4096]{0}', space=vmem, size = 0x1000, scoped, tag = 'input window, operand 3, single buffered']
    #allocation8 [shape = 'u8[4096]{0}', space=vmem, size = 0x1000, scoped, tag = 'input window, operand 4, single buffered']
    #allocation9 [shape = 's32[1]{0}', space=sflag, size = 0x4, scoped, tag = 'scoped memory for tpu_custom_call.1']
    #allocation10 [shape = 'u8[1024]{0}', space=vmem, size = 0x400, scoped, tag = 'input window, operand 5, single buffered']
    #allocation11 [shape = 'u8[16384]{0}', space=vmem, size = 0x4000, scoped, tag = 'input window, operand 6, single buffered']
    #allocation12 [shape = 's32[1]{0}', space=sflag, size = 0x4, scoped, tag = 'scoped memory for tpu_custom_call.1']
    #allocation13 [shape = 'u8[16384]{0}', space=vmem, size = 0x4000, scoped, tag = 'input window, operand 7, single buffered']
    #allocation14 [shape = 'u8[512]{0}', space=vmem, size = 0x400, scoped, tag = 'input window, operand 8, single buffered']
    #allocation15 [shape = 's32[1]{0}', space=sflag, size = 0x4, scoped, tag = 'scoped memory for tpu_custom_call.1']
    #allocation16 [shape = 'u8[16384]{0}', space=vmem, size = 0x4000, scoped, tag = 'input window, operand 10, single buffered']
    #allocation17 [shape = 'u8[16384]{0}', space=vmem, size = 0x4000, scoped, tag = 'input window, operand 11, single buffered']
    #allocation18 [shape = 's32[1]{0}', space=sflag, size = 0x4, scoped, tag = 'scoped memory for tpu_custom_call.1']
    #allocation19 [shape = 'u8[16384]{0}', space=vmem, size = 0x4000, scoped, tag = 'input window, operand 13, single buffered']
    #allocation20 [shape = 'u8[1024]{0}', space=vmem, size = 0x400, scoped, tag = 'output window, operand 0, single buffered']
    #allocation21 [shape = 'u8[2048]{0}', space=vmem, size = 0x800, scoped, tag = 'output window, operand 1, single buffered']
    #allocation22 [shape = 's32[1]{0}', space=sflag, size = 0x4, scoped, tag = 'scoped memory for tpu_custom_call.1']
    #allocation23 [shape = 'u8[2048]{0}', space=vmem, size = 0x800, scoped, tag = 'output window, operand 2, single buffered']
    %24 = vsyncpa [#allocation3], 0
    %25 = vsyncpa [#allocation6], 0
    %26 = vsyncpa [#allocation9], 0
    %27 = vsyncpa [#allocation12], 0
    %28 = vsyncpa [#allocation15], 0
    %29 = vsyncpa [#allocation18], 0
    %30 = vsyncpa [#allocation4], 0
    %31 = vsyncpa [#allocation22], 0
    // Predicated region
    $region2: #{tpu_custom_call.1} parent=1 // pred_check
      _
    $region3: #{tpu_custom_call.1} parent=1 // pred_check_branch
      %33 = sbr.rel (0) target = $region5
    $region4: #{tpu_custom_call.1} parent=1 // pred_region
      %s35 = ssub.s32 64, 64
      %36 = vsyncadd [#allocation3], %s35
      %s37 = sshll.u32 [#allocation2], 4
      %s38 = int_to_ptr.vmem [resolvable:$true] %s37
      %43 = dma.hbm_to_vmem [thread:$0]  %s0, 64, %s38, [#allocation3], 32, 32, 2
    $region5: #{tpu_custom_call.1} parent=1 // pred_fallthru
      _
    // Predicated region
    $region6: #{tpu_custom_call.1} parent=1 // pred_check
      _
    $region7: #{tpu_custom_call.1} parent=1 // pred_check_branch
      %45 = sbr.rel (0) target = $region9
    $region8: #{tpu_custom_call.1} parent=1 // pred_region
      %s47 = ssub.s32 64, 64
      %48 = vsyncadd [#allocation6], %s47
      %s49 = sshll.u32 [#allocation5], 4
      %s50 = int_to_ptr.vmem [resolvable:$true] %s49
      %55 = dma.hbm_to_vmem [thread:$0]  %s1, 64, %s50, [#allocation6], 32, 32, 2
    $region9: #{tpu_custom_call.1} parent=1 // pred_fallthru
      _
    // Predicated region
    $region10: #{tpu_custom_call.1} parent=1 // pred_check
      _
    $region11: #{tpu_custom_call.1} parent=1 // pred_check_branch
      %57 = sbr.rel (0) target = $region13
    $region12: #{tpu_custom_call.1} parent=1 // pred_region
      _
    $region13: #{tpu_custom_call.1} parent=1 // pred_fallthru
      _
    // Predicated region
    $region14: #{tpu_custom_call.1} parent=1 // pred_check
      _
    $region15: #{tpu_custom_call.1} parent=1 // pred_check_branch
      %59 = sbr.rel (0) target = $region17
    $region16: #{tpu_custom_call.1} parent=1 // pred_region
      %s61 = ssub.s32 128, 128
      %62 = vsyncadd [#allocation6], %s61
      %s63 = sshll.u32 [#allocation7], 4
      %s64 = int_to_ptr.vmem [resolvable:$true] %s63
      %69 = dma.hbm_to_vmem [thread:$0]  %s3, 128, %s64, [#allocation6], 64, 64, 4
    $region17: #{tpu_custom_call.1} parent=1 // pred_fallthru
      _
    // Predicated region
    $region18: #{tpu_custom_call.1} parent=1 // pred_check
      _
    $region19: #{tpu_custom_call.1} parent=1 // pred_check_branch
      %71 = sbr.rel (0) target = $region21
    $region20: #{tpu_custom_call.1} parent=1 // pred_region
      %s73 = ssub.s32 128, 128
      %74 = vsyncadd [#allocation9], %s73
      %s75 = sshll.u32 [#allocation8], 4
      %s76 = int_to_ptr.vmem [resolvable:$true] %s75
      %81 = dma.hbm_to_vmem [thread:$0]  %s4, 128, %s76, [#allocation9], 64, 64, 4
    $region21: #{tpu_custom_call.1} parent=1 // pred_fallthru
      _
    // Predicated region
    $region22: #{tpu_custom_call.1} parent=1 // pred_check
      _
    $region23: #{tpu_custom_call.1} parent=1 // pred_check_branch
      %83 = sbr.rel (0) target = $region25
    $region24: #{tpu_custom_call.1} parent=1 // pred_region
      %s85 = ssub.s32 32, 32
      %86 = vsyncadd [#allocation9], %s85
      %s88 = sshll.u32 [#allocation10], 4
      %s89 = int_to_ptr.vmem [resolvable:$true] %s88
      %91 = dma.hbm_to_vmem [thread:$0]  %s5, 32, %s89, [#allocation9]
    $region25: #{tpu_custom_call.1} parent=1 // pred_fallthru
      _
    // Predicated region
    $region26: #{tpu_custom_call.1} parent=1 // pred_check
      _
    $region27: #{tpu_custom_call.1} parent=1 // pred_check_branch
      %93 = sbr.rel (0) target = $region29
    $region28: #{tpu_custom_call.1} parent=1 // pred_region
      %s95 = ssub.s32 512, 512
      %96 = vsyncadd [#allocation12], %s95
      %s97 = sshll.u32 [#allocation11], 4
      %s98 = int_to_ptr.vmem [resolvable:$true] %s97
      %103 = dma.hbm_to_vmem [thread:$0]  %s6, 512, %s98, [#allocation12], 128, 128, 8
    $region29: #{tpu_custom_call.1} parent=1 // pred_fallthru
      _
    // Predicated region
    $region30: #{tpu_custom_call.1} parent=1 // pred_check
      _
    $region31: #{tpu_custom_call.1} parent=1 // pred_check_branch
      %105 = sbr.rel (0) target = $region33
    $region32: #{tpu_custom_call.1} parent=1 // pred_region
      %s107 = ssub.s32 512, 512
      %108 = vsyncadd [#allocation12], %s107
      %s109 = sshll.u32 [#allocation13], 4
      %s110 = int_to_ptr.vmem [resolvable:$true] %s109
      %115 = dma.hbm_to_vmem [thread:$0]  %s7, 512, %s110, [#allocation12], 128, 128, 8
    $region33: #{tpu_custom_call.1} parent=1 // pred_fallthru
      _
    // Predicated region
    $region34: #{tpu_custom_call.1} parent=1 // pred_check
      _
    $region35: #{tpu_custom_call.1} parent=1 // pred_check_branch
      %117 = sbr.rel (0) target = $region37
    $region36: #{tpu_custom_call.1} parent=1 // pred_region
      %s119 = ssub.s32 16, 16
      %120 = vsyncadd [#allocation15], %s119
      %s122 = sshll.u32 [#allocation14], 4
      %s123 = int_to_ptr.vmem [resolvable:$true] %s122
      %125 = dma.hbm_to_vmem [thread:$0]  %s8, 16, %s123, [#allocation15]
    $region37: #{tpu_custom_call.1} parent=1 // pred_fallthru
      _
    // Predicated region
    $region38: #{tpu_custom_call.1} parent=1 // pred_check
      _
    $region39: #{tpu_custom_call.1} parent=1 // pred_check_branch
      %127 = sbr.rel (0) target = $region41
    $region40: #{tpu_custom_call.1} parent=1 // pred_region
      _
    $region41: #{tpu_custom_call.1} parent=1 // pred_fallthru
      _
    // Predicated region
    $region42: #{tpu_custom_call.1} parent=1 // pred_check
      _
    $region43: #{tpu_custom_call.1} parent=1 // pred_check_branch
      %129 = sbr.rel (0) target = $region45
    $region44: #{tpu_custom_call.1} parent=1 // pred_region
      %s131 = ssub.s32 512, 512
      %132 = vsyncadd [#allocation15], %s131
      %s133 = sshll.u32 [#allocation16], 4
      %s134 = int_to_ptr.vmem [resolvable:$true] %s133
      %139 = dma.hbm_to_vmem [thread:$0]  %s10, 512, %s134, [#allocation15], 128, 128, 8
    $region45: #{tpu_custom_call.1} parent=1 // pred_fallthru
      _
    // Predicated region
    $region46: #{tpu_custom_call.1} parent=1 // pred_check
      _
    $region47: #{tpu_custom_call.1} parent=1 // pred_check_branch
      %141 = sbr.rel (0) target = $region49
    $region48: #{tpu_custom_call.1} parent=1 // pred_region
      %s143 = ssub.s32 512, 512
      %144 = vsyncadd [#allocation18], %s143
      %s145 = sshll.u32 [#allocation17], 4
      %s146 = int_to_ptr.vmem [resolvable:$true] %s145
      %151 = dma.hbm_to_vmem [thread:$0]  %s11, 512, %s146, [#allocation18], 128, 128, 8
    $region49: #{tpu_custom_call.1} parent=1 // pred_fallthru
      _
    // Predicated region
    $region50: #{tpu_custom_call.1} parent=1 // pred_check
      _
    $region51: #{tpu_custom_call.1} parent=1 // pred_check_branch
      %153 = sbr.rel (0) target = $region53
    $region52: #{tpu_custom_call.1} parent=1 // pred_region
      _
    $region53: #{tpu_custom_call.1} parent=1 // pred_fallthru
      _
    // Predicated region
    $region54: #{tpu_custom_call.1} parent=1 // pred_check
      _
    $region55: #{tpu_custom_call.1} parent=1 // pred_check_branch
      %155 = sbr.rel (0) target = $region57
    $region56: #{tpu_custom_call.1} parent=1 // pred_region
      %s157 = ssub.s32 512, 512
      %158 = vsyncadd [#allocation18], %s157
      %s159 = sshll.u32 [#allocation19], 4
      %s160 = int_to_ptr.vmem [resolvable:$true] %s159
      %165 = dma.hbm_to_vmem [thread:$0]  %s13, 512, %s160, [#allocation18], 128, 128, 8
    $region57: #{tpu_custom_call.1} parent=1 // pred_fallthru
      _
    // Predicated region
    $region58: #{tpu_custom_call.1} parent=1 // pred_check
      _
    $region59: #{tpu_custom_call.1} parent=1 // pred_check_branch
      %167 = sbr.rel (0) target = $region61
    $region60: #{tpu_custom_call.1} parent=1 // pred_region
      _
    $region61: #{tpu_custom_call.1} parent=1 // pred_fallthru
      _
    // Predicated region
    $region62: #{tpu_custom_call.1} parent=1 // pred_check
      _
    $region63: #{tpu_custom_call.1} parent=1 // pred_check_branch
      %169 = sbr.rel (0) target = $region65
    $region64: #{tpu_custom_call.1} parent=1 // pred_region
      _
    $region65: #{tpu_custom_call.1} parent=1 // pred_fallthru
      _
    // Predicated region
    $region66: #{tpu_custom_call.1} parent=1 // pred_check
      _
    $region67: #{tpu_custom_call.1} parent=1 // pred_check_branch
      %171 = sbr.rel (0) target = $region69
    $region68: #{tpu_custom_call.1} parent=1 // pred_region
      %172 = dma.done [#allocation3], 64
    $region69: #{tpu_custom_call.1} parent=1 // pred_fallthru
      _
    // Predicated region
    $region70: #{tpu_custom_call.1} parent=1 // pred_check
      _
    $region71: #{tpu_custom_call.1} parent=1 // pred_check_branch
      %174 = sbr.rel (0) target = $region73
    $region72: #{tpu_custom_call.1} parent=1 // pred_region
      %175 = dma.done [#allocation6], 64
    $region73: #{tpu_custom_call.1} parent=1 // pred_fallthru
      _
    // Predicated region
    $region74: #{tpu_custom_call.1} parent=1 // pred_check
      _
    $region75: #{tpu_custom_call.1} parent=1 // pred_check_branch
      %177 = sbr.rel (0) target = $region77
    $region76: #{tpu_custom_call.1} parent=1 // pred_region
      %178 = dma.done [#allocation6], 128
    $region77: #{tpu_custom_call.1} parent=1 // pred_fallthru
      _
    // Predicated region
    $region78: #{tpu_custom_call.1} parent=1 // pred_check
      _
    $region79: #{tpu_custom_call.1} parent=1 // pred_check_branch
      %180 = sbr.rel (0) target = $region81
    $region80: #{tpu_custom_call.1} parent=1 // pred_region
      %181 = dma.done [#allocation9], 128
    $region81: #{tpu_custom_call.1} parent=1 // pred_fallthru
      _
    // Predicated region
    $region82: #{tpu_custom_call.1} parent=1 // pred_check
      _
    $region83: #{tpu_custom_call.1} parent=1 // pred_check_branch
      %183 = sbr.rel (0) target = $region85
    $region84: #{tpu_custom_call.1} parent=1 // pred_region
      %184 = dma.done [#allocation9], 32
    $region85: #{tpu_custom_call.1} parent=1 // pred_fallthru
      _
    // Predicated region
    $region86: #{tpu_custom_call.1} parent=1 // pred_check
      _
    $region87: #{tpu_custom_call.1} parent=1 // pred_check_branch
      %186 = sbr.rel (0) target = $region89
    $region88: #{tpu_custom_call.1} parent=1 // pred_region
      %187 = dma.done [#allocation12], 512
    $region89: #{tpu_custom_call.1} parent=1 // pred_fallthru
      _
    // Predicated region
    $region90: #{tpu_custom_call.1} parent=1 // pred_check
      _
    $region91: #{tpu_custom_call.1} parent=1 // pred_check_branch
      %189 = sbr.rel (0) target = $region93
    $region92: #{tpu_custom_call.1} parent=1 // pred_region
      %190 = dma.done [#allocation12], 512
    $region93: #{tpu_custom_call.1} parent=1 // pred_fallthru
      _
    // Predicated region
    $region94: #{tpu_custom_call.1} parent=1 // pred_check
      _
    $region95: #{tpu_custom_call.1} parent=1 // pred_check_branch
      %192 = sbr.rel (0) target = $region97
    $region96: #{tpu_custom_call.1} parent=1 // pred_region
      %193 = dma.done [#allocation15], 16
    $region97: #{tpu_custom_call.1} parent=1 // pred_fallthru
      _
    // Predicated region
    $region98: #{tpu_custom_call.1} parent=1 // pred_check
      _
    $region99: #{tpu_custom_call.1} parent=1 // pred_check_branch
      %195 = sbr.rel (0) target = $region101
    $region100: #{tpu_custom_call.1} parent=1 // pred_region
      %196 = dma.done [#allocation15], 512
    $region101: #{tpu_custom_call.1} parent=1 // pred_fallthru
      _
    // Predicated region
    $region102: #{tpu_custom_call.1} parent=1 // pred_check
      _
    $region103: #{tpu_custom_call.1} parent=1 // pred_check_branch
      %198 = sbr.rel (0) target = $region105
    $region104: #{tpu_custom_call.1} parent=1 // pred_region
      %199 = dma.done [#allocation18], 512
    $region105: #{tpu_custom_call.1} parent=1 // pred_fallthru
      _
    // Predicated region
    $region106: #{tpu_custom_call.1} parent=1 // pred_check
      _
    $region107: #{tpu_custom_call.1} parent=1 // pred_check_branch
      %201 = sbr.rel (0) target = $region109
    $region108: #{tpu_custom_call.1} parent=1 // pred_region
      %202 = dma.done [#allocation18], 512
    $region109: #{tpu_custom_call.1} parent=1 // pred_fallthru
      _
    %v203 = vld [vmem:[#allocation2] sm:$0x3]
    %s204 = scalar_lea.vmem [#allocation2], 2
    %v205 = vld [vmem:[%s204] sm:$0x3]
    %v206 = vld [vmem:[#allocation5] sm:$0x3]
    %s207 = scalar_lea.vmem [#allocation5], 2
    %v208 = vld [vmem:[%s207] sm:$0x3]
    %v209 = vld [vmem:[%s2] sm:$0x3]
    %v210 = vld [vmem:[#allocation11] sm:$0xff]
    %v211 = vld [vmem:[#allocation11 + $0x8] sm:$0xff]
    %v212 = vld [vmem:[#allocation11 + $0x10] sm:$0xff]
    %v213 = vld [vmem:[#allocation11 + $0x18] sm:$0xff]
    %v214 = vld [vmem:[#allocation13] sm:$0xff]
    %v215 = vld [vmem:[#allocation13 + $0x8] sm:$0xff]
    %v216 = vld [vmem:[#allocation13 + $0x10] sm:$0xff]
    %v217 = vld [vmem:[#allocation13 + $0x18] sm:$0xff]
    %vm218 = vcmask 261120
    %v220 = vsel %vm218, %v203, 0
    %222 = vmatprep.subr.mxu0 0.0
    %223 = vmatpush1.msra.mxu0 %v214
    %224 = vmatprep.subr.mxu0 0.0
    %225 = vmatpush1.msra.mxu0 %v215
    %226 = vmatprep.subr.mxu0 0.0
    %227 = vmatpush1.msra.mxu0 %v216
    %228 = vmatprep.subr.mxu0 0.0
    %229 = vmatpush1.msra.mxu0 %v217
    %230 = vmatprep.subr.mxu0 0.0
    %231 = vmatpush1.msra.mxu0 0.0
    %232 = vmatprep.subr.mxu0 0.0
    %233 = vmatpush1.msra.mxu0 0.0
    %234 = vmatprep.subr.mxu0 0.0
    %235 = vmatpush1.msra.mxu0 0.0
    %236 = vmatprep.subr.mxu0 0.0
    %237 = vmatpush1.msra.mxu0 0.0
    %238 = vmatprep.subr.mxu0 0.0
    %239 = vmatpush1.msra.mxu0 0.0
    %240 = vmatprep.subr.mxu0 0.0
    %241 = vmatpush1.msra.mxu0 0.0
    %242 = vmatprep.subr.mxu0 0.0
    %243 = vmatpush1.msra.mxu0 0.0
    %244 = vmatprep.subr.mxu0 0.0
    %245 = vmatpush1.msra.mxu0 0.0
    %246 = vmatprep.subr.mxu0 0.0
    %247 = vmatpush1.msra.mxu0 0.0
    %248 = vmatprep.subr.mxu0 0.0
    %249 = vmatpush1.msra.mxu0 0.0
    %250 = vmatprep.subr.mxu0 0.0
    %251 = vmatpush1.msra.mxu0 0.0
    %252 = vmatprep.subr.mxu0 0.0
    %253 = vmatpush1.msra.mxu0 0.0
    %254 = vmatprep.subr.mxu0 0.0
    %255 = vmatpush1.msra.mxu0 0.0
    %256 = vmatprep.subr.mxu0 0.0
    %257 = vmatpush1.msra.mxu0 0.0
    %258 = vmatprep.subr.mxu0 0.0
    %259 = vmatpush1.msra.mxu0 0.0
    %260 = vmatprep.subr.mxu0 0.0
    %261 = vmatpush1.msra.mxu0 0.0
    %262 = vmatprep.subr.mxu0 0.0
    %263 = vmatpush1.msra.mxu0 0.0
    %264 = vmatprep.subr.mxu0 0.0
    %265 = vmatpush1.msra.mxu0 0.0
    %266 = vmatprep.subr.mxu0 0.0
    %267 = vmatpush1.msra.mxu0 0.0
    %268 = vmatprep.subr.mxu0 0.0
    %269 = vmatpush1.msra.mxu0 0.0
    %270 = vmatprep.subr.mxu0 0.0
    %271 = vmatpush1.msra.mxu0 0.0
    %272 = vmatprep.subr.mxu0 0.0
    %273 = vmatpush1.msra.mxu0 0.0
    %274 = vmatprep.subr.mxu0 0.0
    %275 = vmatpush1.msra.mxu0 0.0
    %276 = vmatprep.subr.mxu0 0.0
    %277 = vmatpush1.msra.mxu0 0.0
    %278 = vmatprep.subr.mxu0 0.0
    %279 = vmatpush1.msra.mxu0 0.0
    %280 = vmatprep.subr.mxu0 0.0
    %281 = vmatpush1.msra.mxu0 0.0
    %282 = vmatprep.subr.mxu0 0.0
    %283 = vmatpush1.msra.mxu0 0.0
    %284 = vmatprep.subr.mxu0 0.0
    %285 = vmatpush1.msra.mxu0 0.0
    %286 = vmatprep.mubr.f32.mxu0 0.0
    %287 = vmatmul.mubr.f32.gmra.mrb[0].mxu0 %v220
    %v288 = vpop.f32.mrb[0].mxu0
    %v289 = vadd.f32 0.0, %v288
    %v290 = vpop.f32.mrb[0].mxu0
    %291 = vdwg.mxu0
    %v293 = vsel %vm218, %v209, 0
    %295 = vmatprep.subr.mxu0 0.0
    %296 = vmatpush1.msra.mxu0 %v210
    %297 = vmatprep.subr.mxu0 0.0
    %298 = vmatpush1.msra.mxu0 %v211
    %299 = vmatprep.subr.mxu0 0.0
    %300 = vmatpush1.msra.mxu0 %v212
    %301 = vmatprep.subr.mxu0 0.0
    %302 = vmatpush1.msra.mxu0 %v213
    %303 = vmatprep.subr.mxu0 0.0
    %304 = vmatpush1.msra.mxu0 0.0
    %305 = vmatprep.subr.mxu0 0.0
    %306 = vmatpush1.msra.mxu0 0.0
    %307 = vmatprep.subr.mxu0 0.0
    %308 = vmatpush1.msra.mxu0 0.0
    %309 = vmatprep.subr.mxu0 0.0
    %310 = vmatpush1.msra.mxu0 0.0
    %311 = vmatprep.subr.mxu0 0.0
    %312 = vmatpush1.msra.mxu0 0.0
    %313 = vmatprep.subr.mxu0 0.0
    %314 = vmatpush1.msra.mxu0 0.0
    %315 = vmatprep.subr.mxu0 0.0
    %316 = vmatpush1.msra.mxu0 0.0
    %317 = vmatprep.subr.mxu0 0.0
    %318 = vmatpush1.msra.mxu0 0.0
    %319 = vmatprep.subr.mxu0 0.0
    %320 = vmatpush1.msra.mxu0 0.0
    %321 = vmatprep.subr.mxu0 0.0
    %322 = vmatpush1.msra.mxu0 0.0
    %323 = vmatprep.subr.mxu0 0.0
    %324 = vmatpush1.msra.mxu0 0.0
    %325 = vmatprep.subr.mxu0 0.0
    %326 = vmatpush1.msra.mxu0 0.0
    %327 = vmatprep.subr.mxu0 0.0
    %328 = vmatpush1.msra.mxu0 0.0
    %329 = vmatprep.subr.mxu0 0.0
    %330 = vmatpush1.msra.mxu0 0.0
    %331 = vmatprep.subr.mxu0 0.0
    %332 = vmatpush1.msra.mxu0 0.0
    %333 = vmatprep.subr.mxu0 0.0
    %334 = vmatpush1.msra.mxu0 0.0
    %335 = vmatprep.subr.mxu0 0.0
    %336 = vmatpush1.msra.mxu0 0.0
    %337 = vmatprep.subr.mxu0 0.0
    %338 = vmatpush1.msra.mxu0 0.0
    %339 = vmatprep.subr.mxu0 0.0
    %340 = vmatpush1.msra.mxu0 0.0
    %341 = vmatprep.subr.mxu0 0.0
    %342 = vmatpush1.msra.mxu0 0.0
    %343 = vmatprep.subr.mxu0 0.0
    %344 = vmatpush1.msra.mxu0 0.0
    %345 = vmatprep.subr.mxu0 0.0
    %346 = vmatpush1.msra.mxu0 0.0
    %347 = vmatprep.subr.mxu0 0.0
    %348 = vmatpush1.msra.mxu0 0.0
    %349 = vmatprep.subr.mxu0 0.0
    %350 = vmatpush1.msra.mxu0 0.0
    %351 = vmatprep.subr.mxu0 0.0
    %352 = vmatpush1.msra.mxu0 0.0
    %353 = vmatprep.subr.mxu0 0.0
    %354 = vmatpush1.msra.mxu0 0.0
    %355 = vmatprep.subr.mxu0 0.0
    %356 = vmatpush1.msra.mxu0 0.0
    %357 = vmatprep.subr.mxu0 0.0
    %358 = vmatpush1.msra.mxu0 0.0
    %359 = vmatprep.mubr.f32.mxu0 0.0
    %360 = vmatmul.mubr.f32.gmra.mrb[0].mxu0 %v293
    %v361 = vpop.f32.mrb[0].mxu0
    %v362 = vadd.f32 %v289, %v361
    %v363 = vpop.f32.mrb[0].mxu0
    %364 = vdwg.mxu0
    %v365 = vld [vmem:[#allocation14] sm:$0x1]
    %v367 = vlaneseq
    %v368 = vshrl.u32 %v367, 7
    %v369 = vsub.s32 0, %v368
    %v370 = vrot.slane %v365, %v369
    %v372 = vadd.f32 %v362, %v370
    %v373 = vmul.f32 %v372, 0.5
    %v374 = vtanh.pop %v373
    %v375 = vadd.f32 %v374, 1.0
    %v376 = vmul.f32 %v375, 0.5
    %v377 = vtanh.pop %v372
    %379 = vrot.lane.b32.xlu0 %v206, 32
    %v380 = vpop.permute.xlu0 %379
    %v382 = vmul.f32 %v376, %v380
    %384 = vrot.lane.b32.xlu0 %v377, 64
    %v385 = vpop.permute.xlu0 %384
    %v387 = vmul.f32 %v376, %v385
    %389 = vrot.lane.b32.xlu0 %v387, 32
    %v390 = vpop.permute.xlu0 %389
    %v392 = vadd.f32 %v382, %v390
    %v393 = vtanh.pop %v392
    %395 = vrot.lane.b32.xlu0 %v393, 64
    %v396 = vpop.permute.xlu0 %395
    %v398 = vmul.f32 %v376, %v396
    %v399 = vld [vmem:[#allocation19] sm:$0xff]
    %v400 = vld [vmem:[#allocation19 + $0x8] sm:$0xff]
    %v401 = vld [vmem:[#allocation19 + $0x10] sm:$0xff]
    %v402 = vld [vmem:[#allocation19 + $0x18] sm:$0xff]
    %v403 = vld [vmem:[%s14] sm:$0x1]
    %v405 = vlaneseq
    %v406 = vshrl.u32 %v405, 7
    %v407 = vsub.s32 0, %v406
    %v408 = vrot.slane %v403, %v407
    %411 = vrot.lane.b32.xlu0 %v398, 32
    %v412 = vpop.permute.xlu0 %411
    %v413 = vsel %vm218, %v412, 0
    %415 = vmatprep.subr.mxu0 0.0
    %416 = vmatpush1.msra.mxu0 %v399
    %417 = vmatprep.subr.mxu0 0.0
    %418 = vmatpush1.msra.mxu0 %v400
    %419 = vmatprep.subr.mxu0 0.0
    %420 = vmatpush1.msra.mxu0 %v401
    %421 = vmatprep.subr.mxu0 0.0
    %422 = vmatpush1.msra.mxu0 %v402
    %423 = vmatprep.subr.mxu0 0.0
    %424 = vmatpush1.msra.mxu0 0.0
    %425 = vmatprep.subr.mxu0 0.0
    %426 = vmatpush1.msra.mxu0 0.0
    %427 = vmatprep.subr.mxu0 0.0
    %428 = vmatpush1.msra.mxu0 0.0
    %429 = vmatprep.subr.mxu0 0.0
    %430 = vmatpush1.msra.mxu0 0.0
    %431 = vmatprep.subr.mxu0 0.0
    %432 = vmatpush1.msra.mxu0 0.0
    %433 = vmatprep.subr.mxu0 0.0
    %434 = vmatpush1.msra.mxu0 0.0
    %435 = vmatprep.subr.mxu0 0.0
    %436 = vmatpush1.msra.mxu0 0.0
    %437 = vmatprep.subr.mxu0 0.0
    %438 = vmatpush1.msra.mxu0 0.0
    %439 = vmatprep.subr.mxu0 0.0
    %440 = vmatpush1.msra.mxu0 0.0
    %441 = vmatprep.subr.mxu0 0.0
    %442 = vmatpush1.msra.mxu0 0.0
    %443 = vmatprep.subr.mxu0 0.0
    %444 = vmatpush1.msra.mxu0 0.0
    %445 = vmatprep.subr.mxu0 0.0
    %446 = vmatpush1.msra.mxu0 0.0
    %447 = vmatprep.subr.mxu0 0.0
    %448 = vmatpush1.msra.mxu0 0.0
    %449 = vmatprep.subr.mxu0 0.0
    %450 = vmatpush1.msra.mxu0 0.0
    %451 = vmatprep.subr.mxu0 0.0
    %452 = vmatpush1.msra.mxu0 0.0
    %453 = vmatprep.subr.mxu0 0.0
    %454 = vmatpush1.msra.mxu0 0.0
    %455 = vmatprep.subr.mxu0 0.0
    %456 = vmatpush1.msra.mxu0 0.0
    %457 = vmatprep.subr.mxu0 0.0
    %458 = vmatpush1.msra.mxu0 0.0
    %459 = vmatprep.subr.mxu0 0.0
    %460 = vmatpush1.msra.mxu0 0.0
    %461 = vmatprep.subr.mxu0 0.0
    %462 = vmatpush1.msra.mxu0 0.0
    %463 = vmatprep.subr.mxu0 0.0
    %464 = vmatpush1.msra.mxu0 0.0
    %465 = vmatprep.subr.mxu0 0.0
    %466 = vmatpush1.msra.mxu0 0.0
    %467 = vmatprep.subr.mxu0 0.0
    %468 = vmatpush1.msra.mxu0 0.0
    %469 = vmatprep.subr.mxu0 0.0
    %470 = vmatpush1.msra.mxu0 0.0
    %471 = vmatprep.subr.mxu0 0.0
    %472 = vmatpush1.msra.mxu0 0.0
    %473 = vmatprep.subr.mxu0 0.0
    %474 = vmatpush1.msra.mxu0 0.0
    %475 = vmatprep.subr.mxu0 0.0
    %476 = vmatpush1.msra.mxu0 0.0
    %477 = vmatprep.subr.mxu0 0.0
    %478 = vmatpush1.msra.mxu0 0.0
    %479 = vmatprep.mubr.f32.mxu0 0.0
    %480 = vmatmul.mubr.f32.gmra.mrb[0].mxu0 %v413
    %v481 = vpop.f32.mrb[0].mxu0
    %v482 = vadd.f32 %v408, %v481
    %v483 = vpop.f32.mrb[0].mxu0
    %484 = vdwg.mxu0
    %v485 = vld [vmem:[#allocation7] sm:$0xf]
    %v486 = vld [vmem:[#allocation7 + $0x4] sm:$0xf]
    %v487 = vunpack.c.l.bf16 %v485
    %v488 = vunpack.c.l.bf16 %v486
    %v491 = vunpack.c.l.s4 1966171168
    %v492 = vunpack.c.0.s8 %v491
    %v493 = vlaneseq
    %v494 = vshrl.u32 %v493, 7
    %v495 = vsub.s32 %v492, %v494
    %v496 = vrot.slane %v482, %v495
    %v497 = vcombine.high %v496, %v496
    %v499 = vunpack.c.l.s4 1966171168
    %v500 = vunpack.c.0.s8 %v499
    %v501 = vlaneseq
    %v502 = vshrl.u32 %v501, 7
    %v503 = vsub.s32 %v500, %v502
    %v504 = vrot.slane %v496, %v503
    %v506 = vunpack.c.l.s4 1966171168
    %v507 = vunpack.c.0.s8 %v506
    %v508 = vlaneseq
    %v509 = vshrl.u32 %v508, 7
    %v510 = vsub.s32 %v507, %v509
    %v511 = vrot.slane %v497, %v510
    %v512 = vlaneseq
    %v513 = vshrl.u32 %v512, 7
    %v514 = vsub.s32 0, %v513
    %v515 = vrot.slane %v504, %v514
    %v516 = vlaneseq
    %v517 = vshrl.u32 %v516, 7
    %v518 = vsub.s32 0, %v517
    %v519 = vrot.slane %v511, %v518
    %v522 = vadd.f32 %v487, %v515
    %v523 = vadd.f32 %v488, %v519
    %v524 = vtanh.pop %v522
    %v525 = vtanh.pop %v523
    %v526 = vld [vmem:[%s15] sm:$0x1]
    %v528 = vlaneseq
    %v529 = vshrl.u32 %v528, 7
    %v530 = vsub.s32 0, %v529
    %v531 = vrot.slane %v526, %v530
    %v533 = vmul.f32 %v524, %v531
    %v534 = vmul.f32 %v525, %v531
    %v535 = vsel %vm218, %v533, 0.0
    %536 = vadd.xlane.f32.xlu0 %v535
    %v537 = vpop.xlane.xlu0 %536
    %v538 = vsel %vm218, %v534, 0.0
    %539 = vadd.xlane.f32.xlu0 %v538
    %v540 = vpop.xlane.xlu0 %539
    %v541 = vrot.slane %v537, 4
    %v542 = vmax.f32 %v537, %v541
    %v543 = vrot.slane %v542, 2
    %v544 = vmax.f32 %v542, %v543
    %v545 = vrot.slane %v544, 1
    %v546 = vmax.f32 %v544, %v545
    %v547 = vrot.slane %v540, 4
    %v548 = vmax.f32 %v540, %v547
    %v549 = vrot.slane %v548, 2
    %v550 = vmax.f32 %v548, %v549
    %v551 = vrot.slane %v550, 1
    %v552 = vmax.f32 %v550, %v551
    %v553 = vsub.f32 %v537, %v546
    %v554 = vsub.f32 %v540, %v552
    %v555 = vmul.f32 %v553, 1.442695
    %v556 = vpow.pop %v555
    %v557 = vmul.f32 %v554, 1.442695
    %v558 = vpow.pop %v557
    %v559 = vld [vmem:[#allocation10] sm:$0x3]
    %v560 = vlaneseq
    %v561 = vshrl.u32 %v560, 7
    %v562 = vsub.s32 0, %v561
    %v563 = vrot.slane %v559, %v562
    %565 = vbcast.lane.b32.xlu0 %v563, 256
    %v566 = vpop.permute.xlu0 %565
    %v567 = vlaneseq
    %v568 = vshrl.u32 %v567, 7
    %v569 = vsub.s32 1, %v568
    %v570 = vrot.slane %v559, %v569
    %572 = vbcast.lane.b32.xlu0 %v570, 256
    %v573 = vpop.permute.xlu0 %572
    %v574 = vmul.f32 %v556, %v566
    %v575 = vmul.f32 %v558, %v573
    %v576 = vrot.slane %v574, 4
    %v577 = vadd.f32 %v574, %v576
    %v578 = vrot.slane %v577, 2
    %v579 = vadd.f32 %v577, %v578
    %v580 = vrot.slane %v579, 1
    %v581 = vadd.f32 %v579, %v580
    %v582 = vrot.slane %v575, 4
    %v583 = vadd.f32 %v575, %v582
    %v584 = vrot.slane %v583, 2
    %v585 = vadd.f32 %v583, %v584
    %v586 = vrot.slane %v585, 1
    %v587 = vadd.f32 %v585, %v586
    %v588 = vrcp.pop %v581
    %v589 = vrcp.pop %v587
    %v590 = vmul.f32 %v581, %v588
    %v591 = vmul.f32 %v587, %v589
    %v592 = vsub.f32 2.0, %v590
    %v593 = vsub.f32 2.0, %v591
    %v594 = vmul.f32 %v588, %v592
    %v595 = vmul.f32 %v589, %v593
    %v596 = vmul.f32 %v574, %v594
    %v597 = vmul.f32 %v575, %v595
    %v598 = vld [vmem:[#allocation8] sm:$0xf]
    %v599 = vld [vmem:[#allocation8 + $0x4] sm:$0xf]
    %v600 = vunpack.c.l.bf16 %v598
    %v601 = vunpack.c.l.bf16 %v599
    %v602 = vmul.f32 %v596, %v600
    %v603 = vmul.f32 %v597, %v601
    %v604 = vsel %vm218, %v602, 0.0
    %v605 = vrot.slane %v604, 4
    %v606 = vadd.f32 %v604, %v605
    %v607 = vrot.slane %v606, 2
    %v608 = vadd.f32 %v606, %v607
    %v609 = vrot.slane %v608, 1
    %v610 = vadd.f32 %v608, %v609
    %v611 = vsel %vm218, %v603, 0.0
    %v612 = vrot.slane %v611, 4
    %v613 = vadd.f32 %v611, %v612
    %v614 = vrot.slane %v613, 2
    %v615 = vadd.f32 %v613, %v614
    %v616 = vrot.slane %v615, 1
    %v617 = vadd.f32 %v615, %v616
    %v618 = vld [vmem:[%s9] sm:$0xff]
    %v619 = vld [vmem:[%s9 + $0x8] sm:$0xff]
    %v620 = vld [vmem:[%s9 + $0x10] sm:$0xff]
    %v621 = vld [vmem:[%s9 + $0x18] sm:$0xff]
    %v622 = vld [vmem:[#allocation16] sm:$0xff]
    %v623 = vld [vmem:[#allocation16 + $0x8] sm:$0xff]
    %v624 = vld [vmem:[#allocation16 + $0x10] sm:$0xff]
    %v625 = vld [vmem:[#allocation16 + $0x18] sm:$0xff]
    %626 = vmatprep.subr.mxu0 0.0
    %627 = vmatpush1.msra.mxu0 %v622
    %628 = vmatprep.subr.mxu0 0.0
    %629 = vmatpush1.msra.mxu0 %v623
    %630 = vmatprep.subr.mxu0 0.0
    %631 = vmatpush1.msra.mxu0 %v624
    %632 = vmatprep.subr.mxu0 0.0
    %633 = vmatpush1.msra.mxu0 %v625
    %634 = vmatprep.subr.mxu0 0.0
    %635 = vmatpush1.msra.mxu0 0.0
    %636 = vmatprep.subr.mxu0 0.0
    %637 = vmatpush1.msra.mxu0 0.0
    %638 = vmatprep.subr.mxu0 0.0
    %639 = vmatpush1.msra.mxu0 0.0
    %640 = vmatprep.subr.mxu0 0.0
    %641 = vmatpush1.msra.mxu0 0.0
    %642 = vmatprep.subr.mxu0 0.0
    %643 = vmatpush1.msra.mxu0 0.0
    %644 = vmatprep.subr.mxu0 0.0
    %645 = vmatpush1.msra.mxu0 0.0
    %646 = vmatprep.subr.mxu0 0.0
    %647 = vmatpush1.msra.mxu0 0.0
    %648 = vmatprep.subr.mxu0 0.0
    %649 = vmatpush1.msra.mxu0 0.0
    %650 = vmatprep.subr.mxu0 0.0
    %651 = vmatpush1.msra.mxu0 0.0
    %652 = vmatprep.subr.mxu0 0.0
    %653 = vmatpush1.msra.mxu0 0.0
    %654 = vmatprep.subr.mxu0 0.0
    %655 = vmatpush1.msra.mxu0 0.0
    %656 = vmatprep.subr.mxu0 0.0
    %657 = vmatpush1.msra.mxu0 0.0
    %658 = vmatprep.subr.mxu0 0.0
    %659 = vmatpush1.msra.mxu0 0.0
    %660 = vmatprep.subr.mxu0 0.0
    %661 = vmatpush1.msra.mxu0 0.0
    %662 = vmatprep.subr.mxu0 0.0
    %663 = vmatpush1.msra.mxu0 0.0
    %664 = vmatprep.subr.mxu0 0.0
    %665 = vmatpush1.msra.mxu0 0.0
    %666 = vmatprep.subr.mxu0 0.0
    %667 = vmatpush1.msra.mxu0 0.0
    %668 = vmatprep.subr.mxu0 0.0
    %669 = vmatpush1.msra.mxu0 0.0
    %670 = vmatprep.subr.mxu0 0.0
    %671 = vmatpush1.msra.mxu0 0.0
    %672 = vmatprep.subr.mxu0 0.0
    %673 = vmatpush1.msra.mxu0 0.0
    %674 = vmatprep.subr.mxu0 0.0
    %675 = vmatpush1.msra.mxu0 0.0
    %676 = vmatprep.subr.mxu0 0.0
    %677 = vmatpush1.msra.mxu0 0.0
    %678 = vmatprep.subr.mxu0 0.0
    %679 = vmatpush1.msra.mxu0 0.0
    %680 = vmatprep.subr.mxu0 0.0
    %681 = vmatpush1.msra.mxu0 0.0
    %682 = vmatprep.subr.mxu0 0.0
    %683 = vmatpush1.msra.mxu0 0.0
    %684 = vmatprep.subr.mxu0 0.0
    %685 = vmatpush1.msra.mxu0 0.0
    %686 = vmatprep.subr.mxu0 0.0
    %687 = vmatpush1.msra.mxu0 0.0
    %688 = vmatprep.subr.mxu0 0.0
    %689 = vmatpush1.msra.mxu0 0.0
    %690 = vmatprep.mubr.f32.mxu0 0.0
    %691 = vmatmul.mubr.f32.gmra.mrb[0].mxu0 %v413
    %v692 = vpop.f32.mrb[0].mxu0
    %v693 = vadd.f32 0.0, %v692
    %v694 = vpop.f32.mrb[0].mxu0
    %695 = vdwg.mxu0
    %vm698 = vcmask 1041409
    %v699 = vsel %vm698, %v617, %v610
    %v700 = vsel %vm218, %v699, 0
    %702 = vmatprep.subr.mxu0 0.0
    %703 = vmatpush1.msra.mxu0 %v618
    %704 = vmatprep.subr.mxu0 0.0
    %705 = vmatpush1.msra.mxu0 %v619
    %706 = vmatprep.subr.mxu0 0.0
    %707 = vmatpush1.msra.mxu0 %v620
    %708 = vmatprep.subr.mxu0 0.0
    %709 = vmatpush1.msra.mxu0 %v621
    %710 = vmatprep.subr.mxu0 0.0
    %711 = vmatpush1.msra.mxu0 0.0
    %712 = vmatprep.subr.mxu0 0.0
    %713 = vmatpush1.msra.mxu0 0.0
    %714 = vmatprep.subr.mxu0 0.0
    %715 = vmatpush1.msra.mxu0 0.0
    %716 = vmatprep.subr.mxu0 0.0
    %717 = vmatpush1.msra.mxu0 0.0
    %718 = vmatprep.subr.mxu0 0.0
    %719 = vmatpush1.msra.mxu0 0.0
    %720 = vmatprep.subr.mxu0 0.0
    %721 = vmatpush1.msra.mxu0 0.0
    %722 = vmatprep.subr.mxu0 0.0
    %723 = vmatpush1.msra.mxu0 0.0
    %724 = vmatprep.subr.mxu0 0.0
    %725 = vmatpush1.msra.mxu0 0.0
    %726 = vmatprep.subr.mxu0 0.0
    %727 = vmatpush1.msra.mxu0 0.0
    %728 = vmatprep.subr.mxu0 0.0
    %729 = vmatpush1.msra.mxu0 0.0
    %730 = vmatprep.subr.mxu0 0.0
    %731 = vmatpush1.msra.mxu0 0.0
    %732 = vmatprep.subr.mxu0 0.0
    %733 = vmatpush1.msra.mxu0 0.0
    %734 = vmatprep.subr.mxu0 0.0
    %735 = vmatpush1.msra.mxu0 0.0
    %736 = vmatprep.subr.mxu0 0.0
    %737 = vmatpush1.msra.mxu0 0.0
    %738 = vmatprep.subr.mxu0 0.0
    %739 = vmatpush1.msra.mxu0 0.0
    %740 = vmatprep.subr.mxu0 0.0
    %741 = vmatpush1.msra.mxu0 0.0
    %742 = vmatprep.subr.mxu0 0.0
    %743 = vmatpush1.msra.mxu0 0.0
    %744 = vmatprep.subr.mxu0 0.0
    %745 = vmatpush1.msra.mxu0 0.0
    %746 = vmatprep.subr.mxu0 0.0
    %747 = vmatpush1.msra.mxu0 0.0
    %748 = vmatprep.subr.mxu0 0.0
    %749 = vmatpush1.msra.mxu0 0.0
    %750 = vmatprep.subr.mxu0 0.0
    %751 = vmatpush1.msra.mxu0 0.0
    %752 = vmatprep.subr.mxu0 0.0
    %753 = vmatpush1.msra.mxu0 0.0
    %754 = vmatprep.subr.mxu0 0.0
    %755 = vmatpush1.msra.mxu0 0.0
    %756 = vmatprep.subr.mxu0 0.0
    %757 = vmatpush1.msra.mxu0 0.0
    %758 = vmatprep.subr.mxu0 0.0
    %759 = vmatpush1.msra.mxu0 0.0
    %760 = vmatprep.subr.mxu0 0.0
    %761 = vmatpush1.msra.mxu0 0.0
    %762 = vmatprep.subr.mxu0 0.0
    %763 = vmatpush1.msra.mxu0 0.0
    %764 = vmatprep.subr.mxu0 0.0
    %765 = vmatpush1.msra.mxu0 0.0
    %766 = vmatprep.mubr.f32.mxu0 0.0
    %767 = vmatmul.mubr.f32.gmra.mrb[0].mxu0 %v700
    %v768 = vpop.f32.mrb[0].mxu0
    %v769 = vadd.f32 %v693, %v768
    %v770 = vpop.f32.mrb[0].mxu0
    %771 = vdwg.mxu0
    %v772 = vld [vmem:[#allocation17] sm:$0xff]
    %v773 = vld [vmem:[#allocation17 + $0x8] sm:$0xff]
    %v774 = vld [vmem:[#allocation17 + $0x10] sm:$0xff]
    %v775 = vld [vmem:[#allocation17 + $0x18] sm:$0xff]
    %v777 = vsel %vm218, %v205, 0
    %779 = vmatprep.subr.mxu0 0.0
    %780 = vmatpush1.msra.mxu0 %v772
    %781 = vmatprep.subr.mxu0 0.0
    %782 = vmatpush1.msra.mxu0 %v773
    %783 = vmatprep.subr.mxu0 0.0
    %784 = vmatpush1.msra.mxu0 %v774
    %785 = vmatprep.subr.mxu0 0.0
    %786 = vmatpush1.msra.mxu0 %v775
    %787 = vmatprep.subr.mxu0 0.0
    %788 = vmatpush1.msra.mxu0 0.0
    %789 = vmatprep.subr.mxu0 0.0
    %790 = vmatpush1.msra.mxu0 0.0
    %791 = vmatprep.subr.mxu0 0.0
    %792 = vmatpush1.msra.mxu0 0.0
    %793 = vmatprep.subr.mxu0 0.0
    %794 = vmatpush1.msra.mxu0 0.0
    %795 = vmatprep.subr.mxu0 0.0
    %796 = vmatpush1.msra.mxu0 0.0
    %797 = vmatprep.subr.mxu0 0.0
    %798 = vmatpush1.msra.mxu0 0.0
    %799 = vmatprep.subr.mxu0 0.0
    %800 = vmatpush1.msra.mxu0 0.0
    %801 = vmatprep.subr.mxu0 0.0
    %802 = vmatpush1.msra.mxu0 0.0
    %803 = vmatprep.subr.mxu0 0.0
    %804 = vmatpush1.msra.mxu0 0.0
    %805 = vmatprep.subr.mxu0 0.0
    %806 = vmatpush1.msra.mxu0 0.0
    %807 = vmatprep.subr.mxu0 0.0
    %808 = vmatpush1.msra.mxu0 0.0
    %809 = vmatprep.subr.mxu0 0.0
    %810 = vmatpush1.msra.mxu0 0.0
    %811 = vmatprep.subr.mxu0 0.0
    %812 = vmatpush1.msra.mxu0 0.0
    %813 = vmatprep.subr.mxu0 0.0
    %814 = vmatpush1.msra.mxu0 0.0
    %815 = vmatprep.subr.mxu0 0.0
    %816 = vmatpush1.msra.mxu0 0.0
    %817 = vmatprep.subr.mxu0 0.0
    %818 = vmatpush1.msra.mxu0 0.0
    %819 = vmatprep.subr.mxu0 0.0
    %820 = vmatpush1.msra.mxu0 0.0
    %821 = vmatprep.subr.mxu0 0.0
    %822 = vmatpush1.msra.mxu0 0.0
    %823 = vmatprep.subr.mxu0 0.0
    %824 = vmatpush1.msra.mxu0 0.0
    %825 = vmatprep.subr.mxu0 0.0
    %826 = vmatpush1.msra.mxu0 0.0
    %827 = vmatprep.subr.mxu0 0.0
    %828 = vmatpush1.msra.mxu0 0.0
    %829 = vmatprep.subr.mxu0 0.0
    %830 = vmatpush1.msra.mxu0 0.0
    %831 = vmatprep.subr.mxu0 0.0
    %832 = vmatpush1.msra.mxu0 0.0
    %833 = vmatprep.subr.mxu0 0.0
    %834 = vmatpush1.msra.mxu0 0.0
    %835 = vmatprep.subr.mxu0 0.0
    %836 = vmatpush1.msra.mxu0 0.0
    %837 = vmatprep.subr.mxu0 0.0
    %838 = vmatpush1.msra.mxu0 0.0
    %839 = vmatprep.subr.mxu0 0.0
    %840 = vmatpush1.msra.mxu0 0.0
    %841 = vmatprep.subr.mxu0 0.0
    %842 = vmatpush1.msra.mxu0 0.0
    %843 = vmatprep.mubr.f32.mxu0 0.0
    %844 = vmatmul.mubr.f32.gmra.mrb[0].mxu0 %v777
    %v845 = vpop.f32.mrb[0].mxu0
    %v846 = vadd.f32 0.0, %v845
    %v847 = vpop.f32.mrb[0].mxu0
    %848 = vdwg.mxu0
    %v849 = vadd.f32 %v769, %v846
    %v850 = vld [vmem:[%s12] sm:$0x1]
    %v852 = vlaneseq
    %v853 = vshrl.u32 %v852, 7
    %v854 = vsub.s32 0, %v853
    %v855 = vrot.slane %v850, %v854
    %v857 = vadd.f32 %v849, %v855
    %v858 = vmul.f32 %v857, 0.5
    %v859 = vtanh.pop %v858
    %v860 = vadd.f32 %v859, 1.0
    %v861 = vmul.f32 %v860, 0.5
    %v862 = vtanh.pop %v857
    %864 = vrot.lane.b32.xlu0 %v208, 32
    %v865 = vpop.permute.xlu0 %864
    %v867 = vmul.f32 %v861, %v865
    %869 = vrot.lane.b32.xlu0 %v862, 64
    %v870 = vpop.permute.xlu0 %869
    %v872 = vmul.f32 %v861, %v870
    %874 = vrot.lane.b32.xlu0 %v872, 32
    %v875 = vpop.permute.xlu0 %874
    %v877 = vadd.f32 %v867, %v875
    %v878 = vtanh.pop %v877
    %880 = vrot.lane.b32.xlu0 %v878, 64
    %v881 = vpop.permute.xlu0 %880
    %v883 = vmul.f32 %v861, %v881
    %885 = vrot.lane.b32.xlu0 %v883, 32
    %v886 = vpop.permute.xlu0 %885
    %vm888 = vcmask 254976
    %889 = vst.msk [vmem:[#allocation20] sm:$0x3] %vm888, %v886
    %891 = vst.msk [vmem:[#allocation21] sm:$0x3] %vm888, %v412
    %s892 = scalar_lea.vmem [#allocation21], 2
    %893 = vst.msk [vmem:[%s892] sm:$0x3] %vm888, %v886
    %895 = vrot.lane.b32.xlu0 %v392, 96
    %v896 = vpop.permute.xlu0 %895
    %898 = vst.msk [vmem:[#allocation23] sm:$0x3] %vm888, %v896
    %900 = vrot.lane.b32.xlu0 %v877, 96
    %v901 = vpop.permute.xlu0 %900
    %s903 = scalar_lea.vmem [#allocation23], 2
    %904 = vst.msk [vmem:[%s903] sm:$0x3] %vm888, %v901
    // Predicated region
    $region110: #{tpu_custom_call.1} parent=1 // pred_check
      _
    $region111: #{tpu_custom_call.1} parent=1 // pred_check_branch
      %906 = sbr.rel (0) target = $region113
    $region112: #{tpu_custom_call.1} parent=1 // pred_region
      %s908 = ssub.s32 32, 32
      %909 = vsyncadd [#allocation4], %s908
      %s911 = sshll.u32 [#allocation20], 4
      %s912 = int_to_ptr.vmem [resolvable:$true] %s911
      %914 = dma.vmem_to_hbm [thread:$0]  %s912, 32, %s16, [#allocation4]
    $region113: #{tpu_custom_call.1} parent=1 // pred_fallthru
      _
    // Predicated region
    $region114: #{tpu_custom_call.1} parent=1 // pred_check
      _
    $region115: #{tpu_custom_call.1} parent=1 // pred_check_branch
      %916 = sbr.rel (0) target = $region117
    $region116: #{tpu_custom_call.1} parent=1 // pred_region
      %s918 = ssub.s32 64, 64
      %919 = vsyncadd [#allocation22], %s918
      %s920 = sshll.u32 [#allocation21], 4
      %s921 = int_to_ptr.vmem [resolvable:$true] %s920
      %926 = dma.vmem_to_hbm [thread:$0]  %s921, 64, %s17, [#allocation22], 32, 32, 2
    $region117: #{tpu_custom_call.1} parent=1 // pred_fallthru
      _
    // Predicated region
    $region118: #{tpu_custom_call.1} parent=1 // pred_check
      _
    $region119: #{tpu_custom_call.1} parent=1 // pred_check_branch
      %928 = sbr.rel (0) target = $region121
    $region120: #{tpu_custom_call.1} parent=1 // pred_region
      %s930 = ssub.s32 64, 64
      %931 = vsyncadd [#allocation22], %s930
      %s932 = sshll.u32 [#allocation23], 4
      %s933 = int_to_ptr.vmem [resolvable:$true] %s932
      %938 = dma.vmem_to_hbm [thread:$0]  %s933, 64, %s18, [#allocation22], 32, 32, 2
    $region121: #{tpu_custom_call.1} parent=1 // pred_fallthru
      _
    // Predicated region
    $region122: #{tpu_custom_call.1} parent=1 // pred_check
      _
    $region123: #{tpu_custom_call.1} parent=1 // pred_check_branch
      %940 = sbr.rel (0) target = $region125
    $region124: #{tpu_custom_call.1} parent=1 // pred_region
      %941 = dma.done [#allocation4], 32
    $region125: #{tpu_custom_call.1} parent=1 // pred_fallthru
      _
    // Predicated region
    $region126: #{tpu_custom_call.1} parent=1 // pred_check
      _
    $region127: #{tpu_custom_call.1} parent=1 // pred_check_branch
      %943 = sbr.rel (0) target = $region129
    $region128: #{tpu_custom_call.1} parent=1 // pred_region
      %944 = dma.done [#allocation22], 64
    $region129: #{tpu_custom_call.1} parent=1 // pred_fallthru
      _
    // Predicated region
    $region130: #{tpu_custom_call.1} parent=1 // pred_check
      _
    $region131: #{tpu_custom_call.1} parent=1 // pred_check_branch
      %946 = sbr.rel (0) target = $region133
    $region132: #{tpu_custom_call.1} parent=1 // pred_region
      %947 = dma.done [#allocation22], 64
    $region133: #{tpu_custom_call.1} parent=1 // pred_fallthru
      _
    %948 = vsyncpa [#allocation3], 1
    %949 = vsyncpa [#allocation6], 1
    %950 = vsyncpa [#allocation9], 1
    %951 = vsyncpa [#allocation12], 1
    %952 = vsyncpa [#allocation15], 1
    %953 = vsyncpa [#allocation18], 1
    %954 = vsyncpa [#allocation4], 1
    %955 = vsyncpa [#allocation22], 1

</llo_original>
